<compile_context>
chip_gen: v5e
topology: v5e:2x2
jax: 0.10.0
libtpu: 0.0.40
codegen_flags: <defaults>
</compile_context>

<pallas_src>
import jax
import jax.numpy as jnp
from jax.experimental import pallas as pl
from jax.experimental.pallas import tpu as pltpu

# ---- model dimensions (small, synthetic) ----
B = 2          # batch (number of prompts)
S = 8          # sequence length (context length)
D = 32         # transformer width
H = 4          # attention heads
HD = D // H    # head dim
FF = 4 * D     # MLP hidden
LAYERS = 2     # transformer depth
PROJ = 32      # text_projection output dim
EPS = 1e-5
NEG_INF = -1e30


# ---------------- in-kernel helpers (kept in f32) ----------------
def _ln(x, g, b):
    mu = jnp.mean(x, axis=-1, keepdims=True)
    var = jnp.mean(jnp.square(x - mu), axis=-1, keepdims=True)
    return (x - mu) * jax.lax.rsqrt(var + EPS) * g + b


def _quick_gelu(x):
    # CLIP uses QuickGELU: x * sigmoid(1.702 x)
    return x * jax.nn.sigmoid(1.702 * x)


# ---------------- fused kernel ----------------
def fused_kernel(eot_ref,                      # SMEM (B,) scalar-prefetched EOT idx
                 x0_ref,                       # (S, D) f32   prompts + pos (this batch)
                 ln1g, ln1b, wqkv, bqkv, wo, bo,
                 ln2g, ln2b, w1, b1, w2, b2,
                 lnfg, lnfb, proj_ref,
                 o_ref,                        # (1, PROJ) f32
                 x_scr, head_scr):             # VMEM (S, D) f32 each
    b = pl.program_id(0)
    l = pl.program_id(1)

    # ---- layer 0: load the (already pos-added) activations for this prompt
    @pl.when(l == 0)
    def _():
        x_scr[...] = x0_ref[...]

    x = x_scr[...]                                              # (S, D) f32

    # ---- multi-head causal self-attention (per prompt, (S,S) scores) ----
    h = _ln(x, ln1g[...], ln1b[...])
    qkv = jnp.dot(h.astype(jnp.bfloat16), wqkv[...],            # bf16 x bf16 -> f32
                  preferred_element_type=jnp.float32) + bqkv[...]   # (S, 3D)
    q = qkv[:, 0 * D:1 * D]      # 1/sqrt(HD) already folded into wqkv/bqkv
    k = qkv[:, 1 * D:2 * D]
    v = qkv[:, 2 * D:3 * D]

    # causal additive mask built in-kernel (cheap VPU work, no HBM traffic)
    row = jax.lax.broadcasted_iota(jnp.int32, (S, S), 0)
    col = jax.lax.broadcasted_iota(jnp.int32, (S, S), 1)
    causal_add = jnp.where(col <= row, 0.0, NEG_INF).astype(jnp.float32)

    for hh in range(H):                                         # static unroll
        lo, hi = hh * HD, (hh + 1) * HD
        qh = q[:, lo:hi].astype(jnp.bfloat16)                   # (S, HD)
        kh = k[:, lo:hi].astype(jnp.bfloat16)
        vh = v[:, lo:hi].astype(jnp.bfloat16)
        s = jax.lax.dot_general(qh, kh, (((1,), (1,)), ((), ())),
                                preferred_element_type=jnp.float32) + causal_add
        m = jnp.max(s, axis=-1, keepdims=True)
        e = jnp.exp(s - m)
        p = e * pl.reciprocal(jnp.sum(e, axis=-1, keepdims=True), approx=True)
        # stash this head's output in its lane slice; ONE wo matmul afterwards
        head_scr[:, lo:hi] = jnp.dot(p.astype(jnp.bfloat16), vh,
                                     preferred_element_type=jnp.float32)

    attn = jnp.dot(head_scr[...].astype(jnp.bfloat16), wo[...],
                   preferred_element_type=jnp.float32) + bo[...]
    x = x + attn

    # ---- MLP (c_fc -> QuickGELU -> c_proj) ----
    h2 = _ln(x, ln2g[...], ln2b[...])
    ff = jnp.dot(h2.astype(jnp.bfloat16), w1[...],
                 preferred_element_type=jnp.float32) + b1[...]
    ff = _quick_gelu(ff)
    ff = jnp.dot(ff.astype(jnp.bfloat16), w2[...],
                 preferred_element_type=jnp.float32) + b2[...]
    x = x + ff

    x_scr[...] = x

    # ---- last layer: ln_final, EOT row gather (pl.ds), text_projection ----
    @pl.when(l == pl.num_programs(1) - 1)
    def _():
        xf = _ln(x, lnfg[...], lnfb[...])                       # (S, D)
        head_scr[...] = xf                                      # reuse scratch
        e_idx = eot_ref[b]
        g = head_scr[pl.ds(e_idx, 1), :]                        # (1, D)
        o_ref[...] = jnp.dot(g.astype(jnp.bfloat16), proj_ref[...],
                             preferred_element_type=jnp.float32)  # (1, PROJ)


# ---------------- BlockSpec helpers (index_maps get (b, l, eot_ref)) -------
def _const_spec(shape):
    nd = len(shape)
    return pl.BlockSpec(shape, lambda b, l, eot, _nd=nd: (0,) * _nd)


def _layer_spec(shape):
    # stacked-per-layer tensor: leading LAYERS axis selected by the layer index
    nd = len(shape)
    return pl.BlockSpec((None,) + tuple(shape[1:]),
                        lambda b, l, eot, _nd=nd: (l,) + (0,) * (_nd - 1))


def _batch_spec():
    # (B, S, D) activations: one prompt per batch grid step
    return pl.BlockSpec((None, S, D), lambda b, l, eot: (b, 0, 0))


# ---------------- deterministic parameter init (canonical, f32) ------------
def init_params(key):
    def nrm(k, shape, std=0.02):
        return std * jax.random.normal(k, shape, dtype=jnp.float32)

    keys = jax.random.split(key, 6)
    return {
        'pos': nrm(keys[0], (S, D), std=0.01),
        'lnfg': jnp.ones((1, D), jnp.float32),
        'lnfb': jnp.zeros((1, D), jnp.float32),
        'proj': nrm(keys[1], (D, PROJ)),
        'ln1g': jnp.ones((LAYERS, 1, D), jnp.float32),
        'ln1b': jnp.zeros((LAYERS, 1, D), jnp.float32),
        'wqkv': nrm(keys[2], (LAYERS, D, 3 * D)),
        'bqkv': jnp.zeros((LAYERS, 1, 3 * D), jnp.float32),
        'wo': nrm(keys[3], (LAYERS, D, D)),
        'bo': jnp.zeros((LAYERS, 1, D), jnp.float32),
        'ln2g': jnp.ones((LAYERS, 1, D), jnp.float32),
        'ln2b': jnp.zeros((LAYERS, 1, D), jnp.float32),
        'w1': nrm(keys[4], (LAYERS, D, FF)),
        'b1': jnp.zeros((LAYERS, 1, FF), jnp.float32),
        'w2': nrm(keys[5], (LAYERS, FF, D)),
        'b2': jnp.zeros((LAYERS, 1, D), jnp.float32),
    }


# ---- one-time kernel-side parameter prep: fold q-scale, cast weights bf16 --
def prepare_params(params):
    scale = 1.0 / (HD ** 0.5)
    wqkv = params['wqkv'].at[:, :, 0:D].multiply(scale)   # Q columns
    bqkv = params['bqkv'].at[:, :, 0:D].multiply(scale)   # Q bias (scale is post-bias)
    return {
        'ln1g': params['ln1g'], 'ln1b': params['ln1b'],
        'wqkv': wqkv.astype(jnp.bfloat16),
        'bqkv': bqkv,                                      # biases stay f32
        'wo': params['wo'].astype(jnp.bfloat16),
        'bo': params['bo'],
        'ln2g': params['ln2g'], 'ln2b': params['ln2b'],
        'w1': params['w1'].astype(jnp.bfloat16),
        'b1': params['b1'],
        'w2': params['w2'].astype(jnp.bfloat16),
        'b2': params['b2'],
        'lnfg': params['lnfg'], 'lnfb': params['lnfb'],
        'proj': params['proj'].astype(jnp.bfloat16),
        'pos': params['pos'],
    }


# ---------------- forward ----------------
@jax.jit
def text_encoder_forward(kp, prompts, tokenized_prompts):
    # hoisted: x0 = prompts + positional_embedding (fuses into XLA input copy)
    x0 = prompts + kp['pos'][None, :, :]                        # (B, S, D) f32
    # EOT position = argmax over token ids (scalar glue) -> SMEM prefetch
    eot = jnp.argmax(tokenized_prompts, axis=-1).astype(jnp.int32)   # (B,)

    grid_spec = pltpu.PrefetchScalarGridSpec(
        num_scalar_prefetch=1,                    # eot -> SMEM, fed to index_maps
        grid=(B, LAYERS),                         # batch parallel, layers arbitrary
        in_specs=[
            _batch_spec(),                        # x0 (prompts + pos)
            _layer_spec((LAYERS, 1, D)),          # ln1g
            _layer_spec((LAYERS, 1, D)),          # ln1b
            _layer_spec((LAYERS, D, 3 * D)),      # wqkv (bf16, q-scale folded)
            _layer_spec((LAYERS, 1, 3 * D)),      # bqkv (f32, q-scale folded)
            _layer_spec((LAYERS, D, D)),          # wo (bf16)
            _layer_spec((LAYERS, 1, D)),          # bo
            _layer_spec((LAYERS, 1, D)),          # ln2g
            _layer_spec((LAYERS, 1, D)),          # ln2b
            _layer_spec((LAYERS, D, FF)),         # w1 (bf16)
            _layer_spec((LAYERS, 1, FF)),         # b1
            _layer_spec((LAYERS, FF, D)),         # w2 (bf16)
            _layer_spec((LAYERS, 1, D)),          # b2
            _const_spec((1, D)),                  # lnfg
            _const_spec((1, D)),                  # lnfb
            _const_spec((D, PROJ)),               # text_projection (bf16)
        ],
        out_specs=pl.BlockSpec((None, 1, PROJ), lambda b, l, eot: (b, 0, 0)),
        scratch_shapes=[pltpu.VMEM((S, D), jnp.float32),        # resident x
                        pltpu.VMEM((S, D), jnp.float32)],       # head outputs / xf
    )

    out = pl.pallas_call(
        fused_kernel,
        out_shape=jax.ShapeDtypeStruct((B, 1, PROJ), jnp.float32),
        grid_spec=grid_spec,
        compiler_params=pltpu.CompilerParams(
            dimension_semantics=("parallel", "arbitrary"),
            vmem_limit_bytes=48 * 1024 * 1024),
    )(eot, x0,
      kp['ln1g'], kp['ln1b'], kp['wqkv'], kp['bqkv'], kp['wo'], kp['bo'],
      kp['ln2g'], kp['ln2b'], kp['w1'], kp['b1'], kp['w2'], kp['b2'],
      kp['lnfg'], kp['lnfb'], kp['proj'])
    return out.reshape(B, PROJ)


# ---------------- pure-JAX reference (correctness check, f32 weights) -------
def _ref_forward(params, prompts, tokens):
    def ln(x, g, b):
        mu = x.mean(-1, keepdims=True)
        var = ((x - mu) ** 2).mean(-1, keepdims=True)
        return (x - mu) / jnp.sqrt(var + EPS) * g + b

    x = prompts + params['pos'][None]
    causal = jnp.tril(jnp.ones((S, S), bool))
    for li in range(LAYERS):
        h = ln(x, params['ln1g'][li], params['ln1b'][li])
        qkv = h @ params['wqkv'][li] + params['bqkv'][li]
        q, k, v = qkv[..., :D], qkv[..., D:2 * D], qkv[..., 2 * D:]
        q = q.reshape(B, S, H, HD) / (HD ** 0.5)
        k = k.reshape(B, S, H, HD)
        v = v.reshape(B, S, H, HD)
        s = jnp.einsum('bqhd,bkhd->bhqk', q, k)
        s = jnp.where(causal[None, None], s, -jnp.inf)
        p = jax.nn.softmax(s, axis=-1)
        o = jnp.einsum('bhqk,bkhd->bqhd', p, v).reshape(B, S, D)
        x = x + o @ params['wo'][li] + params['bo'][li]
        h2 = ln(x, params['ln2g'][li], params['ln2b'][li])
        ff = h2 @ params['w1'][li] + params['b1'][li]
        ff = ff * jax.nn.sigmoid(1.702 * ff)
        x = x + ff @ params['w2'][li] + params['b2'][li]
    x = ln(x, params['lnfg'], params['lnfb'])
    eot = jnp.argmax(tokens, axis=-1)
    return x[jnp.arange(B), eot] @ params['proj']


# ---------------- main ----------------
if __name__ == "__main__":
    key = jax.random.PRNGKey(0)
    kp_key, kt_key, kw_key = jax.random.split(key, 3)

    params = init_params(kw_key)
    kernel_params = prepare_params(params)      # one-time: fold q-scale, cast bf16

    # prompts: (B, S, D) continuous prompt embeddings
    prompts = jax.random.normal(kp_key, (B, S, D), dtype=jnp.float32)

    # tokenized_prompts: (B, S) int token ids; place a large EOT id so the
    # argmax picks a known position per row (positions 5 and 3).
    tokens = jax.random.randint(kt_key, (B, S), 1, 100, dtype=jnp.int32)
    eot_positions = jnp.array([5, 3], dtype=jnp.int32)
    tokens = tokens.at[jnp.arange(B), eot_positions].set(49407)

    out = text_encoder_forward(kernel_params, prompts, tokens)
    out = jax.block_until_ready(out)

    ref = _ref_forward(params, prompts, tokens)

    assert out.shape == (B, PROJ), out.shape
    assert jnp.all(jnp.isfinite(out))
    assert jnp.allclose(out, ref, rtol=1e-2, atol=1e-2), \
        float(jnp.max(jnp.abs(out - ref)))
    print("KERNEL_OK")
</pallas_src>

<mosaic_0001>
module attributes {stable_mosaic.version = 11 : i64} {
  func.func @fused_kernel(%arg0: i32, %arg1: i32, %arg2: memref<2xi32, #tpu.memory_space<smem>>, %arg3: memref<1x8x32xf32, #tpu.memory_space<vmem>>, %arg4: memref<1x1x32xf32, #tpu.memory_space<vmem>>, %arg5: memref<1x1x32xf32, #tpu.memory_space<vmem>>, %arg6: memref<1x32x96xbf16, #tpu.memory_space<vmem>>, %arg7: memref<1x1x96xf32, #tpu.memory_space<vmem>>, %arg8: memref<1x32x32xbf16, #tpu.memory_space<vmem>>, %arg9: memref<1x1x32xf32, #tpu.memory_space<vmem>>, %arg10: memref<1x1x32xf32, #tpu.memory_space<vmem>>, %arg11: memref<1x1x32xf32, #tpu.memory_space<vmem>>, %arg12: memref<1x32x128xbf16, #tpu.memory_space<vmem>>, %arg13: memref<1x1x128xf32, #tpu.memory_space<vmem>>, %arg14: memref<1x128x32xbf16, #tpu.memory_space<vmem>>, %arg15: memref<1x1x32xf32, #tpu.memory_space<vmem>>, %arg16: memref<1x32xf32, #tpu.memory_space<vmem>>, %arg17: memref<1x32xf32, #tpu.memory_space<vmem>>, %arg18: memref<32x32xbf16, #tpu.memory_space<vmem>>, %arg19: memref<1x1x32xf32, #tpu.memory_space<vmem>>, %arg20: memref<8x32xf32, #tpu.memory_space<vmem>>, %arg21: memref<8x32xf32, #tpu.memory_space<vmem>>) attributes {dimension_semantics = [#tpu.dimension_semantics<parallel>, #tpu.dimension_semantics<arbitrary>], iteration_bounds = array<i64: 2, 2>, scalar_prefetch = 1 : i64, scratch_operands = 2 : i64, tpu.core_type = #tpu.core_type<tc>, window_params = [{transform_indices = @transform_0, window_bounds = array<i64: 1, 8, 32>}, {transform_indices = @transform_1, window_bounds = array<i64: 1, 1, 32>}, {transform_indices = @transform_2, window_bounds = array<i64: 1, 1, 32>}, {transform_indices = @transform_3, window_bounds = array<i64: 1, 32, 96>}, {transform_indices = @transform_4, window_bounds = array<i64: 1, 1, 96>}, {transform_indices = @transform_5, window_bounds = array<i64: 1, 32, 32>}, {transform_indices = @transform_6, window_bounds = array<i64: 1, 1, 32>}, {transform_indices = @transform_7, window_bounds = array<i64: 1, 1, 32>}, {transform_indices = @transform_8, window_bounds = array<i64: 1, 1, 32>}, {transform_indices = @transform_9, window_bounds = array<i64: 1, 32, 128>}, {transform_indices = @transform_10, window_bounds = array<i64: 1, 1, 128>}, {transform_indices = @transform_11, window_bounds = array<i64: 1, 128, 32>}, {transform_indices = @transform_12, window_bounds = array<i64: 1, 1, 32>}, {pipeline_mode = #tpu.pipeline_mode<synchronous>, transform_indices = @transform_13, window_bounds = array<i64: 1, 32>}, {pipeline_mode = #tpu.pipeline_mode<synchronous>, transform_indices = @transform_14, window_bounds = array<i64: 1, 32>}, {pipeline_mode = #tpu.pipeline_mode<synchronous>, transform_indices = @transform_15, window_bounds = array<i64: 32, 32>}, {transform_indices = @transform_16, window_bounds = array<i64: 1, 1, 32>}]} {
    %c0_i32 = arith.constant 0 : i32
    %0 = arith.cmpi eq, %arg1, %c0_i32 : i32
    %1 = arith.extui %0 : i1 to i32
    %c0_i32_0 = arith.constant 0 : i32
    %2 = arith.cmpi ne, %1, %c0_i32_0 : i32
    scf.if %2 {
      %c0_81 = arith.constant 0 : index
      %c0_82 = arith.constant 0 : index
      %c0_83 = arith.constant 0 : index
      %196 = vector.load %arg3[%c0_81, %c0_82, %c0_83] : memref<1x8x32xf32, #tpu.memory_space<vmem>>, vector<1x8x32xf32>
      %197 = vector.shape_cast %196 : vector<1x8x32xf32> to vector<8x32xf32>
      %c0_84 = arith.constant 0 : index
      %c0_85 = arith.constant 0 : index
      %198 = vector.load %arg20[%c0_84, %c0_85] : memref<8x32xf32, #tpu.memory_space<vmem>>, vector<8x32xf32>
      tpu.vector_store %arg20[%c0_84, %c0_85], %197 {strides = array<i32>} : memref<8x32xf32, #tpu.memory_space<vmem>>, vector<8x32xf32>,
    } else {
    }
    %c0 = arith.constant 0 : index
    %c0_1 = arith.constant 0 : index
    %3 = vector.load %arg20[%c0, %c0_1] : memref<8x32xf32, #tpu.memory_space<vmem>>, vector<8x32xf32>
    %c0_2 = arith.constant 0 : index
    %c0_3 = arith.constant 0 : index
    %c0_4 = arith.constant 0 : index
    %4 = vector.load %arg4[%c0_2, %c0_3, %c0_4] : memref<1x1x32xf32, #tpu.memory_space<vmem>>, vector<1x1x32xf32>
    %5 = vector.shape_cast %4 : vector<1x1x32xf32> to vector<1x32xf32>
    %c0_5 = arith.constant 0 : index
    %c0_6 = arith.constant 0 : index
    %c0_7 = arith.constant 0 : index
    %6 = vector.load %arg5[%c0_5, %c0_6, %c0_7] : memref<1x1x32xf32, #tpu.memory_space<vmem>>, vector<1x1x32xf32>
    %7 = vector.shape_cast %6 : vector<1x1x32xf32> to vector<1x32xf32>
    %cst = arith.constant dense<0.000000e+00> : vector<8xf32>
    %8 = vector.multi_reduction <add>, %3, %cst [1] : vector<8x32xf32> to vector<8xf32>
    %9 = vector.shape_cast %8 : vector<8xf32> to vector<8x1xf32>
    %cst_8 = arith.constant 3.200000e+01 : f32
    %10 = vector.broadcast %cst_8 : f32 to vector<8x1xf32>
    %11 = arith.divf %9, %10 : vector<8x1xf32>
    %12 = vector.broadcast %11 : vector<8x1xf32> to vector<8x32xf32>
    %13 = arith.subf %3, %12 : vector<8x32xf32>
    %14 = arith.mulf %13, %13 : vector<8x32xf32>
    %cst_9 = arith.constant dense<0.000000e+00> : vector<8xf32>
    %15 = vector.multi_reduction <add>, %14, %cst_9 [1] : vector<8x32xf32> to vector<8xf32>
    %16 = vector.shape_cast %15 : vector<8xf32> to vector<8x1xf32>
    %cst_10 = arith.constant 3.200000e+01 : f32
    %17 = vector.broadcast %cst_10 : f32 to vector<8x1xf32>
    %18 = arith.divf %16, %17 : vector<8x1xf32>
    %19 = vector.broadcast %11 : vector<8x1xf32> to vector<8x32xf32>
    %20 = arith.subf %3, %19 : vector<8x32xf32>
    %cst_11 = arith.constant 9.99999974E-6 : f32
    %21 = vector.broadcast %cst_11 : f32 to vector<8x1xf32>
    %22 = arith.addf %18, %21 : vector<8x1xf32>
    %23 = math.rsqrt %22 : vector<8x1xf32>
    %24 = vector.broadcast %23 : vector<8x1xf32> to vector<8x32xf32>
    %25 = arith.mulf %20, %24 : vector<8x32xf32>
    %26 = vector.broadcast %5 : vector<1x32xf32> to vector<8x32xf32>
    %27 = arith.mulf %25, %26 : vector<8x32xf32>
    %28 = vector.broadcast %7 : vector<1x32xf32> to vector<8x32xf32>
    %29 = arith.addf %27, %28 : vector<8x32xf32>
    %30 = arith.truncf %29 : vector<8x32xf32> to vector<8x32xbf16>
    %c0_12 = arith.constant 0 : index
    %c0_13 = arith.constant 0 : index
    %c0_14 = arith.constant 0 : index
    %31 = vector.load %arg6[%c0_12, %c0_13, %c0_14] : memref<1x32x96xbf16, #tpu.memory_space<vmem>>, vector<1x32x96xbf16>
    %32 = vector.shape_cast %31 : vector<1x32x96xbf16> to vector<32x96xbf16>
    %cst_15 = arith.constant dense<0.000000e+00> : vector<8x96xf32>
    %33 = tpu.matmul %30, %32, %cst_15 {dimension_numbers = #tpu.dot_dimension_numbers<[1], [0], [0], [1], [0, 0, 1, 1], [], []>} : vector<8x32xbf16>, vector<32x96xbf16>, vector<8x96xf32> -> vector<8x96xf32>
    %c0_16 = arith.constant 0 : index
    %c0_17 = arith.constant 0 : index
    %c0_18 = arith.constant 0 : index
    %34 = vector.load %arg7[%c0_16, %c0_17, %c0_18] : memref<1x1x96xf32, #tpu.memory_space<vmem>>, vector<1x1x96xf32>
    %35 = vector.shape_cast %34 : vector<1x1x96xf32> to vector<1x96xf32>
    %36 = vector.broadcast %35 : vector<1x96xf32> to vector<8x96xf32>
    %37 = arith.addf %33, %36 : vector<8x96xf32>
    %38 = vector.extract_strided_slice %37 {offsets = [0, 0], sizes = [8, 32], strides = [1, 1]} : vector<8x96xf32> to vector<8x32xf32>
    %39 = vector.extract_strided_slice %37 {offsets = [0, 32], sizes = [8, 32], strides = [1, 1]} : vector<8x96xf32> to vector<8x32xf32>
    %40 = vector.extract_strided_slice %37 {offsets = [0, 64], sizes = [8, 32], strides = [1, 1]} : vector<8x96xf32> to vector<8x32xf32>
    %41 = tpu.iota {dimensions = array<i32: 0>} : vector<8x8xi32>
    %42 = tpu.iota {dimensions = array<i32: 1>} : vector<8x8xi32>
    %43 = arith.cmpi sle, %42, %41 : vector<8x8xi32>
    %cst_19 = arith.constant 0.000000e+00 : f32
    %cst_20 = arith.constant -1.000000e+30 : f32
    %44 = vector.broadcast %cst_19 : f32 to vector<8x8xf32>
    %45 = vector.broadcast %cst_20 : f32 to vector<8x8xf32>
    %46 = arith.select %43, %44, %45 : vector<8x8xi1>, vector<8x8xf32>
    %47 = vector.extract_strided_slice %38 {offsets = [0, 0], sizes = [8, 8], strides = [1, 1]} : vector<8x32xf32> to vector<8x8xf32>
    %48 = arith.truncf %47 : vector<8x8xf32> to vector<8x8xbf16>
    %49 = vector.extract_strided_slice %39 {offsets = [0, 0], sizes = [8, 8], strides = [1, 1]} : vector<8x32xf32> to vector<8x8xf32>
    %50 = arith.truncf %49 : vector<8x8xf32> to vector<8x8xbf16>
    %51 = vector.extract_strided_slice %40 {offsets = [0, 0], sizes = [8, 8], strides = [1, 1]} : vector<8x32xf32> to vector<8x8xf32>
    %52 = arith.truncf %51 : vector<8x8xf32> to vector<8x8xbf16>
    %cst_21 = arith.constant dense<0.000000e+00> : vector<8x8xf32>
    %53 = tpu.matmul %48, %50, %cst_21 {dimension_numbers = #tpu.dot_dimension_numbers<[1], [1], [0], [0], [0, 0, 1, 0], [], []>} : vector<8x8xbf16>, vector<8x8xbf16>, vector<8x8xf32> -> vector<8x8xf32>
    %54 = arith.addf %53, %46 : vector<8x8xf32>
    %cst_22 = arith.constant dense<0xFF800000> : vector<8xf32>
    %55 = vector.multi_reduction <maximumf>, %54, %cst_22 [1] : vector<8x8xf32> to vector<8xf32>
    %56 = vector.shape_cast %55 : vector<8xf32> to vector<8x1xf32>
    %57 = vector.broadcast %56 : vector<8x1xf32> to vector<8x8xf32>
    %58 = arith.subf %54, %57 : vector<8x8xf32>
    %59 = math.exp %58 : vector<8x8xf32>
    %cst_23 = arith.constant dense<0.000000e+00> : vector<8xf32>
    %60 = vector.multi_reduction <add>, %59, %cst_23 [1] : vector<8x8xf32> to vector<8xf32>
    %61 = vector.shape_cast %60 : vector<8xf32> to vector<8x1xf32>
    %62 = tpu.reciprocal %61 {approx = true} : vector<8x1xf32> -> vector<8x1xf32>
    %63 = vector.broadcast %62 : vector<8x1xf32> to vector<8x8xf32>
    %64 = arith.mulf %59, %63 : vector<8x8xf32>
    %65 = arith.truncf %64 : vector<8x8xf32> to vector<8x8xbf16>
    %cst_24 = arith.constant dense<0.000000e+00> : vector<8x8xf32>
    %66 = tpu.matmul %65, %52, %cst_24 {dimension_numbers = #tpu.dot_dimension_numbers<[1], [0], [0], [1], [0, 0, 1, 1], [], []>} : vector<8x8xbf16>, vector<8x8xbf16>, vector<8x8xf32> -> vector<8x8xf32>
    %c0_25 = arith.constant 0 : index
    %c0_26 = arith.constant 0 : index
    %67 = vector.load %arg21[%c0_25, %c0_26] : memref<8x32xf32, #tpu.memory_space<vmem>>, vector<8x8xf32>
    tpu.vector_store %arg21[%c0_25, %c0_26], %66 {strides = array<i32>} : memref<8x32xf32, #tpu.memory_space<vmem>>, vector<8x8xf32>,
    %68 = vector.extract_strided_slice %38 {offsets = [0, 8], sizes = [8, 8], strides = [1, 1]} : vector<8x32xf32> to vector<8x8xf32>
    %69 = arith.truncf %68 : vector<8x8xf32> to vector<8x8xbf16>
    %70 = vector.extract_strided_slice %39 {offsets = [0, 8], sizes = [8, 8], strides = [1, 1]} : vector<8x32xf32> to vector<8x8xf32>
    %71 = arith.truncf %70 : vector<8x8xf32> to vector<8x8xbf16>
    %72 = vector.extract_strided_slice %40 {offsets = [0, 8], sizes = [8, 8], strides = [1, 1]} : vector<8x32xf32> to vector<8x8xf32>
    %73 = arith.truncf %72 : vector<8x8xf32> to vector<8x8xbf16>
    %cst_27 = arith.constant dense<0.000000e+00> : vector<8x8xf32>
    %74 = tpu.matmul %69, %71, %cst_27 {dimension_numbers = #tpu.dot_dimension_numbers<[1], [1], [0], [0], [0, 0, 1, 0], [], []>} : vector<8x8xbf16>, vector<8x8xbf16>, vector<8x8xf32> -> vector<8x8xf32>
    %75 = arith.addf %74, %46 : vector<8x8xf32>
    %cst_28 = arith.constant dense<0xFF800000> : vector<8xf32>
    %76 = vector.multi_reduction <maximumf>, %75, %cst_28 [1] : vector<8x8xf32> to vector<8xf32>
    %77 = vector.shape_cast %76 : vector<8xf32> to vector<8x1xf32>
    %78 = vector.broadcast %77 : vector<8x1xf32> to vector<8x8xf32>
    %79 = arith.subf %75, %78 : vector<8x8xf32>
    %80 = math.exp %79 : vector<8x8xf32>
    %cst_29 = arith.constant dense<0.000000e+00> : vector<8xf32>
    %81 = vector.multi_reduction <add>, %80, %cst_29 [1] : vector<8x8xf32> to vector<8xf32>
    %82 = vector.shape_cast %81 : vector<8xf32> to vector<8x1xf32>
    %83 = tpu.reciprocal %82 {approx = true} : vector<8x1xf32> -> vector<8x1xf32>
    %84 = vector.broadcast %83 : vector<8x1xf32> to vector<8x8xf32>
    %85 = arith.mulf %80, %84 : vector<8x8xf32>
    %86 = arith.truncf %85 : vector<8x8xf32> to vector<8x8xbf16>
    %cst_30 = arith.constant dense<0.000000e+00> : vector<8x8xf32>
    %87 = tpu.matmul %86, %73, %cst_30 {dimension_numbers = #tpu.dot_dimension_numbers<[1], [0], [0], [1], [0, 0, 1, 1], [], []>} : vector<8x8xbf16>, vector<8x8xbf16>, vector<8x8xf32> -> vector<8x8xf32>
    %c0_31 = arith.constant 0 : index
    %c8 = arith.constant 8 : index
    %88 = vector.load %arg21[%c0_31, %c8] : memref<8x32xf32, #tpu.memory_space<vmem>>, vector<8x8xf32>
    tpu.vector_store %arg21[%c0_31, %c8], %87 {strides = array<i32>} : memref<8x32xf32, #tpu.memory_space<vmem>>, vector<8x8xf32>,
    %89 = vector.extract_strided_slice %38 {offsets = [0, 16], sizes = [8, 8], strides = [1, 1]} : vector<8x32xf32> to vector<8x8xf32>
    %90 = arith.truncf %89 : vector<8x8xf32> to vector<8x8xbf16>
    %91 = vector.extract_strided_slice %39 {offsets = [0, 16], sizes = [8, 8], strides = [1, 1]} : vector<8x32xf32> to vector<8x8xf32>
    %92 = arith.truncf %91 : vector<8x8xf32> to vector<8x8xbf16>
    %93 = vector.extract_strided_slice %40 {offsets = [0, 16], sizes = [8, 8], strides = [1, 1]} : vector<8x32xf32> to vector<8x8xf32>
    %94 = arith.truncf %93 : vector<8x8xf32> to vector<8x8xbf16>
    %cst_32 = arith.constant dense<0.000000e+00> : vector<8x8xf32>
    %95 = tpu.matmul %90, %92, %cst_32 {dimension_numbers = #tpu.dot_dimension_numbers<[1], [1], [0], [0], [0, 0, 1, 0], [], []>} : vector<8x8xbf16>, vector<8x8xbf16>, vector<8x8xf32> -> vector<8x8xf32>
    %96 = arith.addf %95, %46 : vector<8x8xf32>
    %cst_33 = arith.constant dense<0xFF800000> : vector<8xf32>
    %97 = vector.multi_reduction <maximumf>, %96, %cst_33 [1] : vector<8x8xf32> to vector<8xf32>
    %98 = vector.shape_cast %97 : vector<8xf32> to vector<8x1xf32>
    %99 = vector.broadcast %98 : vector<8x1xf32> to vector<8x8xf32>
    %100 = arith.subf %96, %99 : vector<8x8xf32>
    %101 = math.exp %100 : vector<8x8xf32>
    %cst_34 = arith.constant dense<0.000000e+00> : vector<8xf32>
    %102 = vector.multi_reduction <add>, %101, %cst_34 [1] : vector<8x8xf32> to vector<8xf32>
    %103 = vector.shape_cast %102 : vector<8xf32> to vector<8x1xf32>
    %104 = tpu.reciprocal %103 {approx = true} : vector<8x1xf32> -> vector<8x1xf32>
    %105 = vector.broadcast %104 : vector<8x1xf32> to vector<8x8xf32>
    %106 = arith.mulf %101, %105 : vector<8x8xf32>
    %107 = arith.truncf %106 : vector<8x8xf32> to vector<8x8xbf16>
    %cst_35 = arith.constant dense<0.000000e+00> : vector<8x8xf32>
    %108 = tpu.matmul %107, %94, %cst_35 {dimension_numbers = #tpu.dot_dimension_numbers<[1], [0], [0], [1], [0, 0, 1, 1], [], []>} : vector<8x8xbf16>, vector<8x8xbf16>, vector<8x8xf32> -> vector<8x8xf32>
    %c0_36 = arith.constant 0 : index
    %c16 = arith.constant 16 : index
    %109 = vector.load %arg21[%c0_36, %c16] : memref<8x32xf32, #tpu.memory_space<vmem>>, vector<8x8xf32>
    tpu.vector_store %arg21[%c0_36, %c16], %108 {strides = array<i32>} : memref<8x32xf32, #tpu.memory_space<vmem>>, vector<8x8xf32>,
    %110 = vector.extract_strided_slice %38 {offsets = [0, 24], sizes = [8, 8], strides = [1, 1]} : vector<8x32xf32> to vector<8x8xf32>
    %111 = arith.truncf %110 : vector<8x8xf32> to vector<8x8xbf16>
    %112 = vector.extract_strided_slice %39 {offsets = [0, 24], sizes = [8, 8], strides = [1, 1]} : vector<8x32xf32> to vector<8x8xf32>
    %113 = arith.truncf %112 : vector<8x8xf32> to vector<8x8xbf16>
    %114 = vector.extract_strided_slice %40 {offsets = [0, 24], sizes = [8, 8], strides = [1, 1]} : vector<8x32xf32> to vector<8x8xf32>
    %115 = arith.truncf %114 : vector<8x8xf32> to vector<8x8xbf16>
    %cst_37 = arith.constant dense<0.000000e+00> : vector<8x8xf32>
    %116 = tpu.matmul %111, %113, %cst_37 {dimension_numbers = #tpu.dot_dimension_numbers<[1], [1], [0], [0], [0, 0, 1, 0], [], []>} : vector<8x8xbf16>, vector<8x8xbf16>, vector<8x8xf32> -> vector<8x8xf32>
    %117 = arith.addf %116, %46 : vector<8x8xf32>
    %cst_38 = arith.constant dense<0xFF800000> : vector<8xf32>
    %118 = vector.multi_reduction <maximumf>, %117, %cst_38 [1] : vector<8x8xf32> to vector<8xf32>
    %119 = vector.shape_cast %118 : vector<8xf32> to vector<8x1xf32>
    %120 = vector.broadcast %119 : vector<8x1xf32> to vector<8x8xf32>
    %121 = arith.subf %117, %120 : vector<8x8xf32>
    %122 = math.exp %121 : vector<8x8xf32>
    %cst_39 = arith.constant dense<0.000000e+00> : vector<8xf32>
    %123 = vector.multi_reduction <add>, %122, %cst_39 [1] : vector<8x8xf32> to vector<8xf32>
    %124 = vector.shape_cast %123 : vector<8xf32> to vector<8x1xf32>
    %125 = tpu.reciprocal %124 {approx = true} : vector<8x1xf32> -> vector<8x1xf32>
    %126 = vector.broadcast %125 : vector<8x1xf32> to vector<8x8xf32>
    %127 = arith.mulf %122, %126 : vector<8x8xf32>
    %128 = arith.truncf %127 : vector<8x8xf32> to vector<8x8xbf16>
    %cst_40 = arith.constant dense<0.000000e+00> : vector<8x8xf32>
    %129 = tpu.matmul %128, %115, %cst_40 {dimension_numbers = #tpu.dot_dimension_numbers<[1], [0], [0], [1], [0, 0, 1, 1], [], []>} : vector<8x8xbf16>, vector<8x8xbf16>, vector<8x8xf32> -> vector<8x8xf32>
    %c0_41 = arith.constant 0 : index
    %c24 = arith.constant 24 : index
    %130 = vector.load %arg21[%c0_41, %c24] : memref<8x32xf32, #tpu.memory_space<vmem>>, vector<8x8xf32>
    tpu.vector_store %arg21[%c0_41, %c24], %129 {strides = array<i32>} : memref<8x32xf32, #tpu.memory_space<vmem>>, vector<8x8xf32>,
    %c0_42 = arith.constant 0 : index
    %c0_43 = arith.constant 0 : index
    %131 = vector.load %arg21[%c0_42, %c0_43] : memref<8x32xf32, #tpu.memory_space<vmem>>, vector<8x32xf32>
    %132 = arith.truncf %131 : vector<8x32xf32> to vector<8x32xbf16>
    %c0_44 = arith.constant 0 : index
    %c0_45 = arith.constant 0 : index
    %c0_46 = arith.constant 0 : index
    %133 = vector.load %arg8[%c0_44, %c0_45, %c0_46] : memref<1x32x32xbf16, #tpu.memory_space<vmem>>, vector<1x32x32xbf16>
    %134 = vector.shape_cast %133 : vector<1x32x32xbf16> to vector<32x32xbf16>
    %cst_47 = arith.constant dense<0.000000e+00> : vector<8x32xf32>
    %135 = tpu.matmul %132, %134, %cst_47 {dimension_numbers = #tpu.dot_dimension_numbers<[1], [0], [0], [1], [0, 0, 1, 1], [], []>} : vector<8x32xbf16>, vector<32x32xbf16>, vector<8x32xf32> -> vector<8x32xf32>
    %c0_48 = arith.constant 0 : index
    %c0_49 = arith.constant 0 : index
    %c0_50 = arith.constant 0 : index
    %136 = vector.load %arg9[%c0_48, %c0_49, %c0_50] : memref<1x1x32xf32, #tpu.memory_space<vmem>>, vector<1x1x32xf32>
    %137 = vector.shape_cast %136 : vector<1x1x32xf32> to vector<1x32xf32>
    %138 = vector.broadcast %137 : vector<1x32xf32> to vector<8x32xf32>
    %139 = arith.addf %135, %138 : vector<8x32xf32>
    %140 = arith.addf %3, %139 : vector<8x32xf32>
    %c0_51 = arith.constant 0 : index
    %c0_52 = arith.constant 0 : index
    %c0_53 = arith.constant 0 : index
    %141 = vector.load %arg10[%c0_51, %c0_52, %c0_53] : memref<1x1x32xf32, #tpu.memory_space<vmem>>, vector<1x1x32xf32>
    %142 = vector.shape_cast %141 : vector<1x1x32xf32> to vector<1x32xf32>
    %c0_54 = arith.constant 0 : index
    %c0_55 = arith.constant 0 : index
    %c0_56 = arith.constant 0 : index
    %143 = vector.load %arg11[%c0_54, %c0_55, %c0_56] : memref<1x1x32xf32, #tpu.memory_space<vmem>>, vector<1x1x32xf32>
    %144 = vector.shape_cast %143 : vector<1x1x32xf32> to vector<1x32xf32>
    %cst_57 = arith.constant dense<0.000000e+00> : vector<8xf32>
    %145 = vector.multi_reduction <add>, %140, %cst_57 [1] : vector<8x32xf32> to vector<8xf32>
    %146 = vector.shape_cast %145 : vector<8xf32> to vector<8x1xf32>
    %cst_58 = arith.constant 3.200000e+01 : f32
    %147 = vector.broadcast %cst_58 : f32 to vector<8x1xf32>
    %148 = arith.divf %146, %147 : vector<8x1xf32>
    %149 = vector.broadcast %148 : vector<8x1xf32> to vector<8x32xf32>
    %150 = arith.subf %140, %149 : vector<8x32xf32>
    %151 = arith.mulf %150, %150 : vector<8x32xf32>
    %cst_59 = arith.constant dense<0.000000e+00> : vector<8xf32>
    %152 = vector.multi_reduction <add>, %151, %cst_59 [1] : vector<8x32xf32> to vector<8xf32>
    %153 = vector.shape_cast %152 : vector<8xf32> to vector<8x1xf32>
    %cst_60 = arith.constant 3.200000e+01 : f32
    %154 = vector.broadcast %cst_60 : f32 to vector<8x1xf32>
    %155 = arith.divf %153, %154 : vector<8x1xf32>
    %156 = vector.broadcast %148 : vector<8x1xf32> to vector<8x32xf32>
    %157 = arith.subf %140, %156 : vector<8x32xf32>
    %cst_61 = arith.constant 9.99999974E-6 : f32
    %158 = vector.broadcast %cst_61 : f32 to vector<8x1xf32>
    %159 = arith.addf %155, %158 : vector<8x1xf32>
    %160 = math.rsqrt %159 : vector<8x1xf32>
    %161 = vector.broadcast %160 : vector<8x1xf32> to vector<8x32xf32>
    %162 = arith.mulf %157, %161 : vector<8x32xf32>
    %163 = vector.broadcast %142 : vector<1x32xf32> to vector<8x32xf32>
    %164 = arith.mulf %162, %163 : vector<8x32xf32>
    %165 = vector.broadcast %144 : vector<1x32xf32> to vector<8x32xf32>
    %166 = arith.addf %164, %165 : vector<8x32xf32>
    %167 = arith.truncf %166 : vector<8x32xf32> to vector<8x32xbf16>
    %c0_62 = arith.constant 0 : index
    %c0_63 = arith.constant 0 : index
    %c0_64 = arith.constant 0 : index
    %168 = vector.load %arg12[%c0_62, %c0_63, %c0_64] : memref<1x32x128xbf16, #tpu.memory_space<vmem>>, vector<1x32x128xbf16>
    %169 = vector.shape_cast %168 : vector<1x32x128xbf16> to vector<32x128xbf16>
    %cst_65 = arith.constant dense<0.000000e+00> : vector<8x128xf32>
    %170 = tpu.matmul %167, %169, %cst_65 {dimension_numbers = #tpu.dot_dimension_numbers<[1], [0], [0], [1], [0, 0, 1, 1], [], []>} : vector<8x32xbf16>, vector<32x128xbf16>, vector<8x128xf32> -> vector<8x128xf32>
    %c0_66 = arith.constant 0 : index
    %c0_67 = arith.constant 0 : index
    %c0_68 = arith.constant 0 : index
    %171 = vector.load %arg13[%c0_66, %c0_67, %c0_68] : memref<1x1x128xf32, #tpu.memory_space<vmem>>, vector<1x1x128xf32>
    %172 = vector.shape_cast %171 : vector<1x1x128xf32> to vector<1x128xf32>
    %173 = vector.broadcast %172 : vector<1x128xf32> to vector<8x128xf32>
    %174 = arith.addf %170, %173 : vector<8x128xf32>
    %cst_69 = arith.constant 1.702000e+00 : f32
    %175 = vector.broadcast %cst_69 : f32 to vector<8x128xf32>
    %176 = arith.mulf %175, %174 : vector<8x128xf32>
    %177 = arith.negf %176 : vector<8x128xf32>
    %178 = math.exp %177 : vector<8x128xf32>
    %cst_70 = arith.constant 1.000000e+00 : f32
    %179 = vector.broadcast %cst_70 : f32 to vector<8x128xf32>
    %180 = arith.addf %179, %178 : vector<8x128xf32>
    %181 = arith.divf %179, %180 : vector<8x128xf32>
    %182 = arith.mulf %174, %181 : vector<8x128xf32>
    %183 = arith.truncf %182 : vector<8x128xf32> to vector<8x128xbf16>
    %c0_71 = arith.constant 0 : index
    %c0_72 = arith.constant 0 : index
    %c0_73 = arith.constant 0 : index
    %184 = vector.load %arg14[%c0_71, %c0_72, %c0_73] : memref<1x128x32xbf16, #tpu.memory_space<vmem>>, vector<1x128x32xbf16>
    %185 = vector.shape_cast %184 : vector<1x128x32xbf16> to vector<128x32xbf16>
    %cst_74 = arith.constant dense<0.000000e+00> : vector<8x32xf32>
    %186 = tpu.matmul %183, %185, %cst_74 {dimension_numbers = #tpu.dot_dimension_numbers<[1], [0], [0], [1], [0, 0, 1, 1], [], []>} : vector<8x128xbf16>, vector<128x32xbf16>, vector<8x32xf32> -> vector<8x32xf32>
    %c0_75 = arith.constant 0 : index
    %c0_76 = arith.constant 0 : index
    %c0_77 = arith.constant 0 : index
    %187 = vector.load %arg15[%c0_75, %c0_76, %c0_77] : memref<1x1x32xf32, #tpu.memory_space<vmem>>, vector<1x1x32xf32>
    %188 = vector.shape_cast %187 : vector<1x1x32xf32> to vector<1x32xf32>
    %189 = vector.broadcast %188 : vector<1x32xf32> to vector<8x32xf32>
    %190 = arith.addf %186, %189 : vector<8x32xf32>
    %191 = arith.addf %140, %190 : vector<8x32xf32>
    %c0_78 = arith.constant 0 : index
    %c0_79 = arith.constant 0 : index
    %192 = vector.load %arg20[%c0_78, %c0_79] : memref<8x32xf32, #tpu.memory_space<vmem>>, vector<8x32xf32>
    tpu.vector_store %arg20[%c0_78, %c0_79], %191 {strides = array<i32>} : memref<8x32xf32, #tpu.memory_space<vmem>>, vector<8x32xf32>,
    %c1_i32 = arith.constant 1 : i32
    %193 = arith.cmpi eq, %arg1, %c1_i32 : i32
    %194 = arith.extui %193 : i1 to i32
    %c0_i32_80 = arith.constant 0 : i32
    %195 = arith.cmpi ne, %194, %c0_i32_80 : i32
    scf.if %195 {
      %c0_81 = arith.constant 0 : index
      %c0_82 = arith.constant 0 : index
      %196 = vector.load %arg16[%c0_81, %c0_82] : memref<1x32xf32, #tpu.memory_space<vmem>>, vector<1x32xf32>
      %c0_83 = arith.constant 0 : index
      %c0_84 = arith.constant 0 : index
      %197 = vector.load %arg17[%c0_83, %c0_84] : memref<1x32xf32, #tpu.memory_space<vmem>>, vector<1x32xf32>
      %cst_85 = arith.constant dense<0.000000e+00> : vector<8xf32>
      %198 = vector.multi_reduction <add>, %191, %cst_85 [1] : vector<8x32xf32> to vector<8xf32>
      %199 = vector.shape_cast %198 : vector<8xf32> to vector<8x1xf32>
      %cst_86 = arith.constant 3.200000e+01 : f32
      %200 = vector.broadcast %cst_86 : f32 to vector<8x1xf32>
      %201 = arith.divf %199, %200 : vector<8x1xf32>
      %202 = vector.broadcast %201 : vector<8x1xf32> to vector<8x32xf32>
      %203 = arith.subf %191, %202 : vector<8x32xf32>
      %204 = arith.mulf %203, %203 : vector<8x32xf32>
      %cst_87 = arith.constant dense<0.000000e+00> : vector<8xf32>
      %205 = vector.multi_reduction <add>, %204, %cst_87 [1] : vector<8x32xf32> to vector<8xf32>
      %206 = vector.shape_cast %205 : vector<8xf32> to vector<8x1xf32>
      %cst_88 = arith.constant 3.200000e+01 : f32
      %207 = vector.broadcast %cst_88 : f32 to vector<8x1xf32>
      %208 = arith.divf %206, %207 : vector<8x1xf32>
      %209 = vector.broadcast %201 : vector<8x1xf32> to vector<8x32xf32>
      %210 = arith.subf %191, %209 : vector<8x32xf32>
      %cst_89 = arith.constant 9.99999974E-6 : f32
      %211 = vector.broadcast %cst_89 : f32 to vector<8x1xf32>
      %212 = arith.addf %208, %211 : vector<8x1xf32>
      %213 = math.rsqrt %212 : vector<8x1xf32>
      %214 = vector.broadcast %213 : vector<8x1xf32> to vector<8x32xf32>
      %215 = arith.mulf %210, %214 : vector<8x32xf32>
      %216 = vector.broadcast %196 : vector<1x32xf32> to vector<8x32xf32>
      %217 = arith.mulf %215, %216 : vector<8x32xf32>
      %218 = vector.broadcast %197 : vector<1x32xf32> to vector<8x32xf32>
      %219 = arith.addf %217, %218 : vector<8x32xf32>
      %c0_90 = arith.constant 0 : index
      %c0_91 = arith.constant 0 : index
      %220 = vector.load %arg21[%c0_90, %c0_91] : memref<8x32xf32, #tpu.memory_space<vmem>>, vector<8x32xf32>
      tpu.vector_store %arg21[%c0_90, %c0_91], %219 {strides = array<i32>} : memref<8x32xf32, #tpu.memory_space<vmem>>, vector<8x32xf32>,
      %221 = arith.index_cast %arg0 : i32 to index
      %222 = memref.load %arg2[%221] : memref<2xi32, #tpu.memory_space<smem>>
      %223 = arith.index_cast %222 : i32 to index
      %c0_92 = arith.constant 0 : index
      %224 = vector.load %arg21[%223, %c0_92] : memref<8x32xf32, #tpu.memory_space<vmem>>, vector<1x32xf32>
      %225 = arith.truncf %224 : vector<1x32xf32> to vector<1x32xbf16>
      %c0_93 = arith.constant 0 : index
      %c0_94 = arith.constant 0 : index
      %226 = vector.load %arg18[%c0_93, %c0_94] : memref<32x32xbf16, #tpu.memory_space<vmem>>, vector<32x32xbf16>
      %cst_95 = arith.constant dense<0.000000e+00> : vector<1x32xf32>
      %227 = tpu.matmul %225, %226, %cst_95 {dimension_numbers = #tpu.dot_dimension_numbers<[1], [0], [0], [1], [0, 0, 1, 1], [], []>} : vector<1x32xbf16>, vector<32x32xbf16>, vector<1x32xf32> -> vector<1x32xf32>
      %c0_96 = arith.constant 0 : index
      %c0_97 = arith.constant 0 : index
      %c0_98 = arith.constant 0 : index
      %228 = vector.load %arg19[%c0_96, %c0_97, %c0_98] : memref<1x1x32xf32, #tpu.memory_space<vmem>>, vector<1x1x32xf32>
      %229 = vector.shape_cast %228 : vector<1x1x32xf32> to vector<1x32xf32>
      %230 = vector.shape_cast %227 : vector<1x32xf32> to vector<1x1x32xf32>
      tpu.vector_store %arg19[%c0_96, %c0_97, %c0_98], %230 {strides = array<i32>} : memref<1x1x32xf32, #tpu.memory_space<vmem>>, vector<1x1x32xf32>,
    } else {
    }
    return
  }
  func.func @transform_0(%arg0: i32, %arg1: i32, %arg2: memref<2xi32, #tpu.memory_space<smem>>) -> (i32, i32, i32) {
    %c0_i32 = arith.constant 0 : i32
    %c0_i32_0 = arith.constant 0 : i32
    %c0_i32_1 = arith.constant 0 : i32
    return %arg0, %c0_i32, %c0_i32_0 : i32, i32, i32
  }
  func.func @transform_1(%arg0: i32, %arg1: i32, %arg2: memref<2xi32, #tpu.memory_space<smem>>) -> (i32, i32, i32) {
    %c0_i32 = arith.constant 0 : i32
    %c0_i32_0 = arith.constant 0 : i32
    %c0_i32_1 = arith.constant 0 : i32
    return %arg1, %c0_i32, %c0_i32_0 : i32, i32, i32
  }
  func.func @transform_2(%arg0: i32, %arg1: i32, %arg2: memref<2xi32, #tpu.memory_space<smem>>) -> (i32, i32, i32) {
    %c0_i32 = arith.constant 0 : i32
    %c0_i32_0 = arith.constant 0 : i32
    %c0_i32_1 = arith.constant 0 : i32
    return %arg1, %c0_i32, %c0_i32_0 : i32, i32, i32
  }
  func.func @transform_3(%arg0: i32, %arg1: i32, %arg2: memref<2xi32, #tpu.memory_space<smem>>) -> (i32, i32, i32) {
    %c0_i32 = arith.constant 0 : i32
    %c0_i32_0 = arith.constant 0 : i32
    %c0_i32_1 = arith.constant 0 : i32
    return %arg1, %c0_i32, %c0_i32_0 : i32, i32, i32
  }
  func.func @transform_4(%arg0: i32, %arg1: i32, %arg2: memref<2xi32, #tpu.memory_space<smem>>) -> (i32, i32, i32) {
    %c0_i32 = arith.constant 0 : i32
    %c0_i32_0 = arith.constant 0 : i32
    %c0_i32_1 = arith.constant 0 : i32
    return %arg1, %c0_i32, %c0_i32_0 : i32, i32, i32
  }
  func.func @transform_5(%arg0: i32, %arg1: i32, %arg2: memref<2xi32, #tpu.memory_space<smem>>) -> (i32, i32, i32) {
    %c0_i32 = arith.constant 0 : i32
    %c0_i32_0 = arith.constant 0 : i32
    %c0_i32_1 = arith.constant 0 : i32
    return %arg1, %c0_i32, %c0_i32_0 : i32, i32, i32
  }
  func.func @transform_6(%arg0: i32, %arg1: i32, %arg2: memref<2xi32, #tpu.memory_space<smem>>) -> (i32, i32, i32) {
    %c0_i32 = arith.constant 0 : i32
    %c0_i32_0 = arith.constant 0 : i32
    %c0_i32_1 = arith.constant 0 : i32
    return %arg1, %c0_i32, %c0_i32_0 : i32, i32, i32
  }
  func.func @transform_7(%arg0: i32, %arg1: i32, %arg2: memref<2xi32, #tpu.memory_space<smem>>) -> (i32, i32, i32) {
    %c0_i32 = arith.constant 0 : i32
    %c0_i32_0 = arith.constant 0 : i32
    %c0_i32_1 = arith.constant 0 : i32
    return %arg1, %c0_i32, %c0_i32_0 : i32, i32, i32
  }
  func.func @transform_8(%arg0: i32, %arg1: i32, %arg2: memref<2xi32, #tpu.memory_space<smem>>) -> (i32, i32, i32) {
    %c0_i32 = arith.constant 0 : i32
    %c0_i32_0 = arith.constant 0 : i32
    %c0_i32_1 = arith.constant 0 : i32
    return %arg1, %c0_i32, %c0_i32_0 : i32, i32, i32
  }
  func.func @transform_9(%arg0: i32, %arg1: i32, %arg2: memref<2xi32, #tpu.memory_space<smem>>) -> (i32, i32, i32) {
    %c0_i32 = arith.constant 0 : i32
    %c0_i32_0 = arith.constant 0 : i32
    %c0_i32_1 = arith.constant 0 : i32
    return %arg1, %c0_i32, %c0_i32_0 : i32, i32, i32
  }
  func.func @transform_10(%arg0: i32, %arg1: i32, %arg2: memref<2xi32, #tpu.memory_space<smem>>) -> (i32, i32, i32) {
    %c0_i32 = arith.constant 0 : i32
    %c0_i32_0 = arith.constant 0 : i32
    %c0_i32_1 = arith.constant 0 : i32
    return %arg1, %c0_i32, %c0_i32_0 : i32, i32, i32
  }
  func.func @transform_11(%arg0: i32, %arg1: i32, %arg2: memref<2xi32, #tpu.memory_space<smem>>) -> (i32, i32, i32) {
    %c0_i32 = arith.constant 0 : i32
    %c0_i32_0 = arith.constant 0 : i32
    %c0_i32_1 = arith.constant 0 : i32
    return %arg1, %c0_i32, %c0_i32_0 : i32, i32, i32
  }
  func.func @transform_12(%arg0: i32, %arg1: i32, %arg2: memref<2xi32, #tpu.memory_space<smem>>) -> (i32, i32, i32) {
    %c0_i32 = arith.constant 0 : i32
    %c0_i32_0 = arith.constant 0 : i32
    %c0_i32_1 = arith.constant 0 : i32
    return %arg1, %c0_i32, %c0_i32_0 : i32, i32, i32
  }
  func.func @transform_13(%arg0: i32, %arg1: i32, %arg2: memref<2xi32, #tpu.memory_space<smem>>) -> (i32, i32) {
    %c0_i32 = arith.constant 0 : i32
    %c0_i32_0 = arith.constant 0 : i32
    %c0_i32_1 = arith.constant 0 : i32
    return %c0_i32, %c0_i32_0 : i32, i32
  }
  func.func @transform_14(%arg0: i32, %arg1: i32, %arg2: memref<2xi32, #tpu.memory_space<smem>>) -> (i32, i32) {
    %c0_i32 = arith.constant 0 : i32
    %c0_i32_0 = arith.constant 0 : i32
    %c0_i32_1 = arith.constant 0 : i32
    return %c0_i32, %c0_i32_0 : i32, i32
  }
  func.func @transform_15(%arg0: i32, %arg1: i32, %arg2: memref<2xi32, #tpu.memory_space<smem>>) -> (i32, i32) {
    %c0_i32 = arith.constant 0 : i32
    %c0_i32_0 = arith.constant 0 : i32
    %c0_i32_1 = arith.constant 0 : i32
    return %c0_i32, %c0_i32_0 : i32, i32
  }
  func.func @transform_16(%arg0: i32, %arg1: i32, %arg2: memref<2xi32, #tpu.memory_space<smem>>) -> (i32, i32, i32) {
    %c0_i32 = arith.constant 0 : i32
    %c0_i32_0 = arith.constant 0 : i32
    %c0_i32_1 = arith.constant 0 : i32
    return %arg0, %c0_i32, %c0_i32_0 : i32, i32, i32
  }
}

</mosaic_0001>

<llo_original>
// kernel: text_encoder_forward.1
$region0: #{text_encoder_forward.1}
  #allocation0 [shape = 'u32[]', space=smem, size = 0x4, offset = 0x4, fixed_abs, tag = 'smem constant byte address 0x4 - core index']
  #allocation1 [shape = 'u32[72,128]{1,0:T(1,128)}', space=vmem, size = 0x9000, scoped, tag = 'internal scratch']
  #allocation2 [shape = 'f32[8,32]{1,0:T(8,128)}', space=vmem, size = 0x1000, scoped, tag = 'scratch operand']
  #allocation3 [shape = 'f32[8,32]{1,0:T(8,128)}', space=vmem, size = 0x1000, scoped, tag = 'scratch operand']
  #allocation4 [shape = 's32[1]{0}', space=sflag, size = 0x4, scoped, tag = 'scoped memory for text_encoder_forward.1']
  #allocation5 [shape = 'u8[512]{0}', space=smem, size = 0x200, scoped, tag = 'prefetched SMEM operand 0']
  %s0 = inlined_call_operand.vmem [shape: s32[2], index: 0, kind: input, shape index: {}]
  %s1 = inlined_call_operand.vmem [shape: f32[2,8,32], index: 1, kind: input, shape index: {}]
  %s2 = inlined_call_operand.vmem [shape: f32[2,1,32], index: 2, kind: input, shape index: {}]
  %s3 = inlined_call_operand.vmem [shape: f32[2,1,32], index: 3, kind: input, shape index: {}]
  %s4 = inlined_call_operand.vmem [shape: bf16[2,32,96], index: 4, kind: input, shape index: {}]
  %s5 = inlined_call_operand.vmem [shape: f32[2,1,96], index: 5, kind: input, shape index: {}]
  %s6 = inlined_call_operand.vmem [shape: bf16[2,32,32], index: 6, kind: input, shape index: {}]
  %s7 = inlined_call_operand.vmem [shape: f32[2,1,32], index: 7, kind: input, shape index: {}]
  %s8 = inlined_call_operand.vmem [shape: f32[2,1,32], index: 8, kind: input, shape index: {}]
  %s9 = inlined_call_operand.vmem [shape: f32[2,1,32], index: 9, kind: input, shape index: {}]
  %s10 = inlined_call_operand.vmem [shape: bf16[2,32,128], index: 10, kind: input, shape index: {}]
  %s11 = inlined_call_operand.vmem [shape: f32[2,1,128], index: 11, kind: input, shape index: {}]
  %s12 = inlined_call_operand.vmem [shape: bf16[2,128,32], index: 12, kind: input, shape index: {}]
  %s13 = inlined_call_operand.vmem [shape: f32[2,1,32], index: 13, kind: input, shape index: {}]
  %s14 = inlined_call_operand.vmem [shape: f32[1,32], index: 14, kind: input, shape index: {}]
  %s15 = inlined_call_operand.vmem [shape: f32[1,32], index: 15, kind: input, shape index: {}]
  %s16 = inlined_call_operand.vmem [shape: bf16[32,32], index: 16, kind: input, shape index: {}]
  %s17 = inlined_call_operand.hbm [shape: f32[2,1,32], index: 17, kind: output, shape index: {}]
  %s18 = sld [smem:[#allocation0]]
  $region105: #{text_encoder_forward.1} parent=0
    _
  %s20 = ssub.s32 1, %s18
  %s21 = scalar_select 0, %s20, %s18
  %s23 = sshll.u32 %s0, 4
  %s24 = int_to_ptr.vmem [resolvable:$true] %s23
  %26 = dma.vmem_to_smem %s24, 16, [#allocation5], [#allocation4]
  %28 = dma.done [#allocation4], 16
  %29 = sfence
  $region1: #{text_encoder_forward.1} parent=0
    #allocation6 [shape = 'u8[1024]{0}', space=vmem, size = 0x400, scoped, tag = 'output window, operand 0']
    #allocation7 [shape = 's32[2]{0}', space=sflag, size = 0x8, scoped, tag = 'scoped memory for text_encoder_forward.1']
    %30 = vsyncpa [#allocation7], 0
    %s31 = scalar_lea.sflag [#allocation7], 1
    %32 = vsyncpa %s31, 0
    loop: start=0, step=1, limit=6
    $region2: #{text_encoder_forward.1} parent=1 // loop_pre_header
      _
    $region3: #{text_encoder_forward.1} parent=1 // loop_header
      %s34 = sphi 0, %s38
      %p35 = scmp.ge.s32.totalorder %s34, 6
      %s41 = sphi 0, %s53
      %s42 = sphi 0, %s49
      %s43 = sphi 0, %s41
      %s44 = sphi 0, %s42
      %s45 = sphi 0, %s43
      %s46 = sphi 0, %s44
      %s56 = sphi 0, %s58
      %s59 = sphi 0, %s56
      %s60 = sphi 0, %s59
      %s76 = sphi 0, %s60
      %s82 = sphi 0, %s84
      %s85 = sphi 0, %s82
      %s86 = sphi 0, %s85
      %s102 = sphi 0, %s86
      %s108 = sphi 0, %s110
      %s111 = sphi 0, %s108
      %s112 = sphi 0, %s111
      %s128 = sphi 0, %s112
      %s134 = sphi 0, %s136
      %s137 = sphi 0, %s134
      %s138 = sphi 0, %s137
      %s154 = sphi 0, %s138
      %s160 = sphi 0, %s162
      %s163 = sphi 0, %s160
      %s164 = sphi 0, %s163
      %s180 = sphi 0, %s164
      %s186 = sphi 0, %s188
      %s189 = sphi 0, %s186
      %s190 = sphi 0, %s189
      %s206 = sphi 0, %s190
      %s212 = sphi 0, %s214
      %s215 = sphi 0, %s212
      %s216 = sphi 0, %s215
      %s232 = sphi 0, %s216
      %s238 = sphi 0, %s240
      %s241 = sphi 0, %s238
      %s242 = sphi 0, %s241
      %s258 = sphi 0, %s242
      %s264 = sphi 0, %s266
      %s267 = sphi 0, %s264
      %s268 = sphi 0, %s267
      %s284 = sphi 0, %s268
      %s290 = sphi 0, %s292
      %s293 = sphi 0, %s290
      %s294 = sphi 0, %s293
      %s310 = sphi 0, %s294
      %s316 = sphi 0, %s318
      %s319 = sphi 0, %s316
      %s320 = sphi 0, %s319
      %s336 = sphi 0, %s320
      %s342 = sphi 0, %s344
      %s345 = sphi 0, %s342
      %s346 = sphi 0, %s345
      %s362 = sphi 0, %s346
      %s368 = sphi 0, %s370
      %s371 = sphi 0, %s368
      %s372 = sphi 0, %s371
      %s388 = sphi 0, %s372
      %s392 = sphi 0, %s392
      %s394 = sphi 0, %s392
      %s395 = sphi 0, %s394
      %s409 = sphi 0, %s395
      %s413 = sphi 0, %s413
      %s415 = sphi 0, %s413
      %s416 = sphi 0, %s415
      %s430 = sphi 0, %s416
      %s434 = sphi 0, %s434
      %s436 = sphi 0, %s434
      %s437 = sphi 0, %s436
      %s451 = sphi 0, %s437
      %s457 = sphi 0, %s459
      %s460 = sphi 0, %s457
      %s461 = sphi 0, %s460
      %s477 = sphi 0, %s461
    $region4: #{text_encoder_forward.1} parent=1 // loop_header_branch
      %37 = sbr.rel (%p35) target = $region8
    $region5: #{text_encoder_forward.1} parent=1 // loop_body
      %s39 = ssub.s32 %s34, 1
      %s40 = ssub.s32 %s34, 2
      %s47 = sadd.s32 1, %s42
      %p48 = scmp.ge.s32.totalorder %s47, 2
      %s49 = scalar_select %p48, 0, %s47
      %s50 = sadd.s32 1, %s41
      %s51 = scalar_select %p48, %s50, %s41
      %p52 = scmp.ge.s32.totalorder %s51, 2
      %s53 = scalar_select %p52, 0, %s51
      %s54 = ssub.s32 %s41, %s53
      %p55 = scmp.eq.s32.totalorder %s54, 0
      %s57 = sadd.s32 %s56, 1
      %s58 = scalar_select %p55, %s56, %s57
      %p61 = pneg %p55
      %p62 = scmp.eq.s32.totalorder %s34, 3
      %p63 = por %p61, %p62
      %p64 = scmp.ne.s32.totalorder %s56, %s59
      %p65 = scmp.eq.s32.totalorder %s34, 0
      %p66 = por %p64, %p65
      %p67 = scmp.ne.s32.totalorder %s56, %s59
      %p68 = scmp.eq.s32.totalorder %s39, 3
      %p69 = por %p67, %p68
      %p70 = scmp.ne.s32.totalorder %s59, %s60
      %p71 = scmp.eq.s32.totalorder %s39, 0
      %p72 = por %p70, %p71
      %p73 = scmp.ne.s32.totalorder %s59, %s60
      %p74 = scmp.eq.s32.totalorder %s40, 3
      %p75 = por %p73, %p74
      %p77 = scmp.ne.s32.totalorder %s60, %s76
      %p78 = scmp.eq.s32.totalorder %s40, 0
      %p79 = por %p77, %p78
      %s80 = ssub.s32 %s42, %s49
      %p81 = scmp.eq.s32.totalorder %s80, 0
      %s83 = sadd.s32 %s82, 1
      %s84 = scalar_select %p81, %s82, %s83
      %p87 = pneg %p81
      %p88 = scmp.eq.s32.totalorder %s34, 3
      %p89 = por %p87, %p88
      %p90 = scmp.ne.s32.totalorder %s82, %s85
      %p91 = scmp.eq.s32.totalorder %s34, 0
      %p92 = por %p90, %p91
      %p93 = scmp.ne.s32.totalorder %s82, %s85
      %p94 = scmp.eq.s32.totalorder %s39, 3
      %p95 = por %p93, %p94
      %p96 = scmp.ne.s32.totalorder %s85, %s86
      %p97 = scmp.eq.s32.totalorder %s39, 0
      %p98 = por %p96, %p97
      %p99 = scmp.ne.s32.totalorder %s85, %s86
      %p100 = scmp.eq.s32.totalorder %s40, 3
      %p101 = por %p99, %p100
      %p103 = scmp.ne.s32.totalorder %s86, %s102
      %p104 = scmp.eq.s32.totalorder %s40, 0
      %p105 = por %p103, %p104
      %s106 = ssub.s32 %s42, %s49
      %p107 = scmp.eq.s32.totalorder %s106, 0
      %s109 = sadd.s32 %s108, 1
      %s110 = scalar_select %p107, %s108, %s109
      %p113 = pneg %p107
      %p114 = scmp.eq.s32.totalorder %s34, 3
      %p115 = por %p113, %p114
      %p116 = scmp.ne.s32.totalorder %s108, %s111
      %p117 = scmp.eq.s32.totalorder %s34, 0
      %p118 = por %p116, %p117
      %p119 = scmp.ne.s32.totalorder %s108, %s111
      %p120 = scmp.eq.s32.totalorder %s39, 3
      %p121 = por %p119, %p120
      %p122 = scmp.ne.s32.totalorder %s111, %s112
      %p123 = scmp.eq.s32.totalorder %s39, 0
      %p124 = por %p122, %p123
      %p125 = scmp.ne.s32.totalorder %s111, %s112
      %p126 = scmp.eq.s32.totalorder %s40, 3
      %p127 = por %p125, %p126
      %p129 = scmp.ne.s32.totalorder %s112, %s128
      %p130 = scmp.eq.s32.totalorder %s40, 0
      %p131 = por %p129, %p130
      %s132 = ssub.s32 %s42, %s49
      %p133 = scmp.eq.s32.totalorder %s132, 0
      %s135 = sadd.s32 %s134, 1
      %s136 = scalar_select %p133, %s134, %s135
      %p139 = pneg %p133
      %p140 = scmp.eq.s32.totalorder %s34, 3
      %p141 = por %p139, %p140
      %p142 = scmp.ne.s32.totalorder %s134, %s137
      %p143 = scmp.eq.s32.totalorder %s34, 0
      %p144 = por %p142, %p143
      %p145 = scmp.ne.s32.totalorder %s134, %s137
      %p146 = scmp.eq.s32.totalorder %s39, 3
      %p147 = por %p145, %p146
      %p148 = scmp.ne.s32.totalorder %s137, %s138
      %p149 = scmp.eq.s32.totalorder %s39, 0
      %p150 = por %p148, %p149
      %p151 = scmp.ne.s32.totalorder %s137, %s138
      %p152 = scmp.eq.s32.totalorder %s40, 3
      %p153 = por %p151, %p152
      %p155 = scmp.ne.s32.totalorder %s138, %s154
      %p156 = scmp.eq.s32.totalorder %s40, 0
      %p157 = por %p155, %p156
      %s158 = ssub.s32 %s42, %s49
      %p159 = scmp.eq.s32.totalorder %s158, 0
      %s161 = sadd.s32 %s160, 1
      %s162 = scalar_select %p159, %s160, %s161
      %p165 = pneg %p159
      %p166 = scmp.eq.s32.totalorder %s34, 3
      %p167 = por %p165, %p166
      %p168 = scmp.ne.s32.totalorder %s160, %s163
      %p169 = scmp.eq.s32.totalorder %s34, 0
      %p170 = por %p168, %p169
      %p171 = scmp.ne.s32.totalorder %s160, %s163
      %p172 = scmp.eq.s32.totalorder %s39, 3
      %p173 = por %p171, %p172
      %p174 = scmp.ne.s32.totalorder %s163, %s164
      %p175 = scmp.eq.s32.totalorder %s39, 0
      %p176 = por %p174, %p175
      %p177 = scmp.ne.s32.totalorder %s163, %s164
      %p178 = scmp.eq.s32.totalorder %s40, 3
      %p179 = por %p177, %p178
      %p181 = scmp.ne.s32.totalorder %s164, %s180
      %p182 = scmp.eq.s32.totalorder %s40, 0
      %p183 = por %p181, %p182
      %s184 = ssub.s32 %s42, %s49
      %p185 = scmp.eq.s32.totalorder %s184, 0
      %s187 = sadd.s32 %s186, 1
      %s188 = scalar_select %p185, %s186, %s187
      %p191 = pneg %p185
      %p192 = scmp.eq.s32.totalorder %s34, 3
      %p193 = por %p191, %p192
      %p194 = scmp.ne.s32.totalorder %s186, %s189
      %p195 = scmp.eq.s32.totalorder %s34, 0
      %p196 = por %p194, %p195
      %p197 = scmp.ne.s32.totalorder %s186, %s189
      %p198 = scmp.eq.s32.totalorder %s39, 3
      %p199 = por %p197, %p198
      %p200 = scmp.ne.s32.totalorder %s189, %s190
      %p201 = scmp.eq.s32.totalorder %s39, 0
      %p202 = por %p200, %p201
      %p203 = scmp.ne.s32.totalorder %s189, %s190
      %p204 = scmp.eq.s32.totalorder %s40, 3
      %p205 = por %p203, %p204
      %p207 = scmp.ne.s32.totalorder %s190, %s206
      %p208 = scmp.eq.s32.totalorder %s40, 0
      %p209 = por %p207, %p208
      %s210 = ssub.s32 %s42, %s49
      %p211 = scmp.eq.s32.totalorder %s210, 0
      %s213 = sadd.s32 %s212, 1
      %s214 = scalar_select %p211, %s212, %s213
      %p217 = pneg %p211
      %p218 = scmp.eq.s32.totalorder %s34, 3
      %p219 = por %p217, %p218
      %p220 = scmp.ne.s32.totalorder %s212, %s215
      %p221 = scmp.eq.s32.totalorder %s34, 0
      %p222 = por %p220, %p221
      %p223 = scmp.ne.s32.totalorder %s212, %s215
      %p224 = scmp.eq.s32.totalorder %s39, 3
      %p225 = por %p223, %p224
      %p226 = scmp.ne.s32.totalorder %s215, %s216
      %p227 = scmp.eq.s32.totalorder %s39, 0
      %p228 = por %p226, %p227
      %p229 = scmp.ne.s32.totalorder %s215, %s216
      %p230 = scmp.eq.s32.totalorder %s40, 3
      %p231 = por %p229, %p230
      %p233 = scmp.ne.s32.totalorder %s216, %s232
      %p234 = scmp.eq.s32.totalorder %s40, 0
      %p235 = por %p233, %p234
      %s236 = ssub.s32 %s42, %s49
      %p237 = scmp.eq.s32.totalorder %s236, 0
      %s239 = sadd.s32 %s238, 1
      %s240 = scalar_select %p237, %s238, %s239
      %p243 = pneg %p237
      %p244 = scmp.eq.s32.totalorder %s34, 3
      %p245 = por %p243, %p244
      %p246 = scmp.ne.s32.totalorder %s238, %s241
      %p247 = scmp.eq.s32.totalorder %s34, 0
      %p248 = por %p246, %p247
      %p249 = scmp.ne.s32.totalorder %s238, %s241
      %p250 = scmp.eq.s32.totalorder %s39, 3
      %p251 = por %p249, %p250
      %p252 = scmp.ne.s32.totalorder %s241, %s242
      %p253 = scmp.eq.s32.totalorder %s39, 0
      %p254 = por %p252, %p253
      %p255 = scmp.ne.s32.totalorder %s241, %s242
      %p256 = scmp.eq.s32.totalorder %s40, 3
      %p257 = por %p255, %p256
      %p259 = scmp.ne.s32.totalorder %s242, %s258
      %p260 = scmp.eq.s32.totalorder %s40, 0
      %p261 = por %p259, %p260
      %s262 = ssub.s32 %s42, %s49
      %p263 = scmp.eq.s32.totalorder %s262, 0
      %s265 = sadd.s32 %s264, 1
      %s266 = scalar_select %p263, %s264, %s265
      %p269 = pneg %p263
      %p270 = scmp.eq.s32.totalorder %s34, 3
      %p271 = por %p269, %p270
      %p272 = scmp.ne.s32.totalorder %s264, %s267
      %p273 = scmp.eq.s32.totalorder %s34, 0
      %p274 = por %p272, %p273
      %p275 = scmp.ne.s32.totalorder %s264, %s267
      %p276 = scmp.eq.s32.totalorder %s39, 3
      %p277 = por %p275, %p276
      %p278 = scmp.ne.s32.totalorder %s267, %s268
      %p279 = scmp.eq.s32.totalorder %s39, 0
      %p280 = por %p278, %p279
      %p281 = scmp.ne.s32.totalorder %s267, %s268
      %p282 = scmp.eq.s32.totalorder %s40, 3
      %p283 = por %p281, %p282
      %p285 = scmp.ne.s32.totalorder %s268, %s284
      %p286 = scmp.eq.s32.totalorder %s40, 0
      %p287 = por %p285, %p286
      %s288 = ssub.s32 %s42, %s49
      %p289 = scmp.eq.s32.totalorder %s288, 0
      %s291 = sadd.s32 %s290, 1
      %s292 = scalar_select %p289, %s290, %s291
      %p295 = pneg %p289
      %p296 = scmp.eq.s32.totalorder %s34, 3
      %p297 = por %p295, %p296
      %p298 = scmp.ne.s32.totalorder %s290, %s293
      %p299 = scmp.eq.s32.totalorder %s34, 0
      %p300 = por %p298, %p299
      %p301 = scmp.ne.s32.totalorder %s290, %s293
      %p302 = scmp.eq.s32.totalorder %s39, 3
      %p303 = por %p301, %p302
      %p304 = scmp.ne.s32.totalorder %s293, %s294
      %p305 = scmp.eq.s32.totalorder %s39, 0
      %p306 = por %p304, %p305
      %p307 = scmp.ne.s32.totalorder %s293, %s294
      %p308 = scmp.eq.s32.totalorder %s40, 3
      %p309 = por %p307, %p308
      %p311 = scmp.ne.s32.totalorder %s294, %s310
      %p312 = scmp.eq.s32.totalorder %s40, 0
      %p313 = por %p311, %p312
      %s314 = ssub.s32 %s42, %s49
      %p315 = scmp.eq.s32.totalorder %s314, 0
      %s317 = sadd.s32 %s316, 1
      %s318 = scalar_select %p315, %s316, %s317
      %p321 = pneg %p315
      %p322 = scmp.eq.s32.totalorder %s34, 3
      %p323 = por %p321, %p322
      %p324 = scmp.ne.s32.totalorder %s316, %s319
      %p325 = scmp.eq.s32.totalorder %s34, 0
      %p326 = por %p324, %p325
      %p327 = scmp.ne.s32.totalorder %s316, %s319
      %p328 = scmp.eq.s32.totalorder %s39, 3
      %p329 = por %p327, %p328
      %p330 = scmp.ne.s32.totalorder %s319, %s320
      %p331 = scmp.eq.s32.totalorder %s39, 0
      %p332 = por %p330, %p331
      %p333 = scmp.ne.s32.totalorder %s319, %s320
      %p334 = scmp.eq.s32.totalorder %s40, 3
      %p335 = por %p333, %p334
      %p337 = scmp.ne.s32.totalorder %s320, %s336
      %p338 = scmp.eq.s32.totalorder %s40, 0
      %p339 = por %p337, %p338
      %s340 = ssub.s32 %s42, %s49
      %p341 = scmp.eq.s32.totalorder %s340, 0
      %s343 = sadd.s32 %s342, 1
      %s344 = scalar_select %p341, %s342, %s343
      %p347 = pneg %p341
      %p348 = scmp.eq.s32.totalorder %s34, 3
      %p349 = por %p347, %p348
      %p350 = scmp.ne.s32.totalorder %s342, %s345
      %p351 = scmp.eq.s32.totalorder %s34, 0
      %p352 = por %p350, %p351
      %p353 = scmp.ne.s32.totalorder %s342, %s345
      %p354 = scmp.eq.s32.totalorder %s39, 3
      %p355 = por %p353, %p354
      %p356 = scmp.ne.s32.totalorder %s345, %s346
      %p357 = scmp.eq.s32.totalorder %s39, 0
      %p358 = por %p356, %p357
      %p359 = scmp.ne.s32.totalorder %s345, %s346
      %p360 = scmp.eq.s32.totalorder %s40, 3
      %p361 = por %p359, %p360
      %p363 = scmp.ne.s32.totalorder %s346, %s362
      %p364 = scmp.eq.s32.totalorder %s40, 0
      %p365 = por %p363, %p364
      %s366 = ssub.s32 %s42, %s49
      %p367 = scmp.eq.s32.totalorder %s366, 0
      %s369 = sadd.s32 %s368, 1
      %s370 = scalar_select %p367, %s368, %s369
      %p373 = pneg %p367
      %p374 = scmp.eq.s32.totalorder %s34, 3
      %p375 = por %p373, %p374
      %p376 = scmp.ne.s32.totalorder %s368, %s371
      %p377 = scmp.eq.s32.totalorder %s34, 0
      %p378 = por %p376, %p377
      %p379 = scmp.ne.s32.totalorder %s368, %s371
      %p380 = scmp.eq.s32.totalorder %s39, 3
      %p381 = por %p379, %p380
      %p382 = scmp.ne.s32.totalorder %s371, %s372
      %p383 = scmp.eq.s32.totalorder %s39, 0
      %p384 = por %p382, %p383
      %p385 = scmp.ne.s32.totalorder %s371, %s372
      %p386 = scmp.eq.s32.totalorder %s40, 3
      %p387 = por %p385, %p386
      %p389 = scmp.ne.s32.totalorder %s372, %s388
      %p390 = scmp.eq.s32.totalorder %s40, 0
      %p391 = por %p389, %p390
      %s393 = sadd.s32 %s392, 1
      %p396 = scmp.eq.s32.totalorder %s34, 3
      %p397 = scmp.ne.s32.totalorder %s392, %s394
      %p398 = scmp.eq.s32.totalorder %s34, 0
      %p399 = por %p397, %p398
      %p400 = scmp.ne.s32.totalorder %s392, %s394
      %p401 = scmp.eq.s32.totalorder %s39, 3
      %p402 = por %p400, %p401
      %p403 = scmp.ne.s32.totalorder %s394, %s395
      %p404 = scmp.eq.s32.totalorder %s39, 0
      %p405 = por %p403, %p404
      %p406 = scmp.ne.s32.totalorder %s394, %s395
      %p407 = scmp.eq.s32.totalorder %s40, 3
      %p408 = por %p406, %p407
      %p410 = scmp.ne.s32.totalorder %s395, %s409
      %p411 = scmp.eq.s32.totalorder %s40, 0
      %p412 = por %p410, %p411
      %s414 = sadd.s32 %s413, 1
      %p417 = scmp.eq.s32.totalorder %s34, 3
      %p418 = scmp.ne.s32.totalorder %s413, %s415
      %p419 = scmp.eq.s32.totalorder %s34, 0
      %p420 = por %p418, %p419
      %p421 = scmp.ne.s32.totalorder %s413, %s415
      %p422 = scmp.eq.s32.totalorder %s39, 3
      %p423 = por %p421, %p422
      %p424 = scmp.ne.s32.totalorder %s415, %s416
      %p425 = scmp.eq.s32.totalorder %s39, 0
      %p426 = por %p424, %p425
      %p427 = scmp.ne.s32.totalorder %s415, %s416
      %p428 = scmp.eq.s32.totalorder %s40, 3
      %p429 = por %p427, %p428
      %p431 = scmp.ne.s32.totalorder %s416, %s430
      %p432 = scmp.eq.s32.totalorder %s40, 0
      %p433 = por %p431, %p432
      %s435 = sadd.s32 %s434, 1
      %p438 = scmp.eq.s32.totalorder %s34, 3
      %p439 = scmp.ne.s32.totalorder %s434, %s436
      %p440 = scmp.eq.s32.totalorder %s34, 0
      %p441 = por %p439, %p440
      %p442 = scmp.ne.s32.totalorder %s434, %s436
      %p443 = scmp.eq.s32.totalorder %s39, 3
      %p444 = por %p442, %p443
      %p445 = scmp.ne.s32.totalorder %s436, %s437
      %p446 = scmp.eq.s32.totalorder %s39, 0
      %p447 = por %p445, %p446
      %p448 = scmp.ne.s32.totalorder %s436, %s437
      %p449 = scmp.eq.s32.totalorder %s40, 3
      %p450 = por %p448, %p449
      %p452 = scmp.ne.s32.totalorder %s437, %s451
      %p453 = scmp.eq.s32.totalorder %s40, 0
      %p454 = por %p452, %p453
      %s455 = ssub.s32 %s41, %s53
      %p456 = scmp.eq.s32.totalorder %s455, 0
      %s458 = sadd.s32 %s457, 1
      %s459 = scalar_select %p456, %s457, %s458
      %p462 = pneg %p456
      %p463 = scmp.eq.s32.totalorder %s34, 3
      %p464 = por %p462, %p463
      %p465 = scmp.ne.s32.totalorder %s457, %s460
      %p466 = scmp.eq.s32.totalorder %s34, 0
      %p467 = por %p465, %p466
      %p468 = scmp.ne.s32.totalorder %s457, %s460
      %p469 = scmp.eq.s32.totalorder %s39, 3
      %p470 = por %p468, %p469
      %p471 = scmp.ne.s32.totalorder %s460, %s461
      %p472 = scmp.eq.s32.totalorder %s39, 0
      %p473 = por %p471, %p472
      %p474 = scmp.ne.s32.totalorder %s460, %s461
      %p475 = scmp.eq.s32.totalorder %s40, 3
      %p476 = por %p474, %p475
      %p478 = scmp.ne.s32.totalorder %s461, %s477
      %p479 = scmp.eq.s32.totalorder %s40, 0
      %p480 = por %p478, %p479
      %p481 = scmp.le.s32.totalorder 1, %s34
      %p482 = scmp.lt.s32.totalorder %s34, 5
      %p483 = pnand %p481, %p482
      %p484 = pneg %p483
      // Predicated region
      $region9: #{text_encoder_forward.1} parent=5 // pred_check
        _
      $region10: #{text_encoder_forward.1} parent=5 // pred_check_branch
        %486 = sbr.rel (%p483) target = $region12
      $region11: #{text_encoder_forward.1} parent=5 // pred_region
        %s487 = ssub.s32 %s34, 1
        // Predicated region
        $region13: #{text_encoder_forward.1} parent=11 // pred_check
          %p488 = pneg %p405
        $region14: #{text_encoder_forward.1} parent=11 // pred_check_branch
          %490 = sbr.rel (%p488) target = $region16
        $region15: #{text_encoder_forward.1} parent=11 // pred_region
          _
        $region16: #{text_encoder_forward.1} parent=11 // pred_fallthru
          _
        // Predicated region
        $region17: #{text_encoder_forward.1} parent=11 // pred_check
          %p491 = pneg %p426
        $region18: #{text_encoder_forward.1} parent=11 // pred_check_branch
          %493 = sbr.rel (%p491) target = $region20
        $region19: #{text_encoder_forward.1} parent=11 // pred_region
          _
        $region20: #{text_encoder_forward.1} parent=11 // pred_fallthru
          _
        // Predicated region
        $region21: #{text_encoder_forward.1} parent=11 // pred_check
          %p494 = pneg %p447
        $region22: #{text_encoder_forward.1} parent=11 // pred_check_branch
          %496 = sbr.rel (%p494) target = $region24
        $region23: #{text_encoder_forward.1} parent=11 // pred_region
          _
        $region24: #{text_encoder_forward.1} parent=11 // pred_fallthru
          _
      $region12: #{text_encoder_forward.1} parent=5 // pred_fallthru
        _
      %p497 = scmp.lt.s32.totalorder %s34, 4
      // Predicated region
      $region25: #{text_encoder_forward.1} parent=5 // pred_check
        %p498 = pneg %p497
      $region26: #{text_encoder_forward.1} parent=5 // pred_check_branch
        %500 = sbr.rel (%p498) target = $region28
      $region27: #{text_encoder_forward.1} parent=5 // pred_region
        // Predicated region
        $region29: #{text_encoder_forward.1} parent=27 // pred_check
          %p501 = pneg %p66
        $region30: #{text_encoder_forward.1} parent=27 // pred_check_branch
          %503 = sbr.rel (%p501) target = $region32
        $region31: #{text_encoder_forward.1} parent=27 // pred_region
          %p504 = scmp.lt.s32.totalorder %s41, 1
          %s505 = scalar_select %p504, %s41, 1
          %s506 = smul.addr %s505, 8
          %s507 = scalar_lea.vmem %s1, %s506
        $region32: #{text_encoder_forward.1} parent=27 // pred_fallthru
          _
        // Predicated region
        $region33: #{text_encoder_forward.1} parent=27 // pred_check
          %p508 = pneg %p92
        $region34: #{text_encoder_forward.1} parent=27 // pred_check_branch
          %510 = sbr.rel (%p508) target = $region36
        $region35: #{text_encoder_forward.1} parent=27 // pred_region
          %p511 = scmp.lt.s32.totalorder %s42, 1
          %s512 = scalar_select %p511, %s42, 1
          %s513 = scalar_lea.vmem %s2, %s512
        $region36: #{text_encoder_forward.1} parent=27 // pred_fallthru
          _
        // Predicated region
        $region37: #{text_encoder_forward.1} parent=27 // pred_check
          %p514 = pneg %p118
        $region38: #{text_encoder_forward.1} parent=27 // pred_check_branch
          %516 = sbr.rel (%p514) target = $region40
        $region39: #{text_encoder_forward.1} parent=27 // pred_region
          %p517 = scmp.lt.s32.totalorder %s42, 1
          %s518 = scalar_select %p517, %s42, 1
          %s519 = scalar_lea.vmem %s3, %s518
        $region40: #{text_encoder_forward.1} parent=27 // pred_fallthru
          _
        // Predicated region
        $region41: #{text_encoder_forward.1} parent=27 // pred_check
          %p520 = pneg %p144
        $region42: #{text_encoder_forward.1} parent=27 // pred_check_branch
          %522 = sbr.rel (%p520) target = $region44
        $region43: #{text_encoder_forward.1} parent=27 // pred_region
          %p523 = scmp.lt.s32.totalorder %s42, 1
          %s524 = scalar_select %p523, %s42, 1
          %s525 = smul.addr %s524, 4
          %s526 = smul.addr %s525, 4
          %s527 = scalar_lea.vmem %s4, %s526
        $region44: #{text_encoder_forward.1} parent=27 // pred_fallthru
          _
        // Predicated region
        $region45: #{text_encoder_forward.1} parent=27 // pred_check
          %p528 = pneg %p170
        $region46: #{text_encoder_forward.1} parent=27 // pred_check_branch
          %530 = sbr.rel (%p528) target = $region48
        $region47: #{text_encoder_forward.1} parent=27 // pred_region
          %p531 = scmp.lt.s32.totalorder %s42, 1
          %s532 = scalar_select %p531, %s42, 1
          %s533 = scalar_lea.vmem %s5, %s532
        $region48: #{text_encoder_forward.1} parent=27 // pred_fallthru
          _
        // Predicated region
        $region49: #{text_encoder_forward.1} parent=27 // pred_check
          %p534 = pneg %p196
        $region50: #{text_encoder_forward.1} parent=27 // pred_check_branch
          %536 = sbr.rel (%p534) target = $region52
        $region51: #{text_encoder_forward.1} parent=27 // pred_region
          %p537 = scmp.lt.s32.totalorder %s42, 1
          %s538 = scalar_select %p537, %s42, 1
          %s539 = smul.addr %s538, 4
          %s540 = smul.addr %s539, 4
          %s541 = scalar_lea.vmem %s6, %s540
        $region52: #{text_encoder_forward.1} parent=27 // pred_fallthru
          _
        // Predicated region
        $region53: #{text_encoder_forward.1} parent=27 // pred_check
          %p542 = pneg %p222
        $region54: #{text_encoder_forward.1} parent=27 // pred_check_branch
          %544 = sbr.rel (%p542) target = $region56
        $region55: #{text_encoder_forward.1} parent=27 // pred_region
          %p545 = scmp.lt.s32.totalorder %s42, 1
          %s546 = scalar_select %p545, %s42, 1
          %s547 = scalar_lea.vmem %s7, %s546
        $region56: #{text_encoder_forward.1} parent=27 // pred_fallthru
          _
        // Predicated region
        $region57: #{text_encoder_forward.1} parent=27 // pred_check
          %p548 = pneg %p248
        $region58: #{text_encoder_forward.1} parent=27 // pred_check_branch
          %550 = sbr.rel (%p548) target = $region60
        $region59: #{text_encoder_forward.1} parent=27 // pred_region
          %p551 = scmp.lt.s32.totalorder %s42, 1
          %s552 = scalar_select %p551, %s42, 1
          %s553 = scalar_lea.vmem %s8, %s552
        $region60: #{text_encoder_forward.1} parent=27 // pred_fallthru
          _
        // Predicated region
        $region61: #{text_encoder_forward.1} parent=27 // pred_check
          %p554 = pneg %p274
        $region62: #{text_encoder_forward.1} parent=27 // pred_check_branch
          %556 = sbr.rel (%p554) target = $region64
        $region63: #{text_encoder_forward.1} parent=27 // pred_region
          %p557 = scmp.lt.s32.totalorder %s42, 1
          %s558 = scalar_select %p557, %s42, 1
          %s559 = scalar_lea.vmem %s9, %s558
        $region64: #{text_encoder_forward.1} parent=27 // pred_fallthru
          _
        // Predicated region
        $region65: #{text_encoder_forward.1} parent=27 // pred_check
          %p560 = pneg %p300
        $region66: #{text_encoder_forward.1} parent=27 // pred_check_branch
          %562 = sbr.rel (%p560) target = $region68
        $region67: #{text_encoder_forward.1} parent=27 // pred_region
          %p563 = scmp.lt.s32.totalorder %s42, 1
          %s564 = scalar_select %p563, %s42, 1
          %s565 = smul.addr %s564, 4
          %s566 = smul.addr %s565, 4
          %s567 = scalar_lea.vmem %s10, %s566
        $region68: #{text_encoder_forward.1} parent=27 // pred_fallthru
          _
        // Predicated region
        $region69: #{text_encoder_forward.1} parent=27 // pred_check
          %p568 = pneg %p326
        $region70: #{text_encoder_forward.1} parent=27 // pred_check_branch
          %570 = sbr.rel (%p568) target = $region72
        $region71: #{text_encoder_forward.1} parent=27 // pred_region
          %p571 = scmp.lt.s32.totalorder %s42, 1
          %s572 = scalar_select %p571, %s42, 1
          %s573 = scalar_lea.vmem %s11, %s572
        $region72: #{text_encoder_forward.1} parent=27 // pred_fallthru
          _
        // Predicated region
        $region73: #{text_encoder_forward.1} parent=27 // pred_check
          %p574 = pneg %p352
        $region74: #{text_encoder_forward.1} parent=27 // pred_check_branch
          %576 = sbr.rel (%p574) target = $region76
        $region75: #{text_encoder_forward.1} parent=27 // pred_region
          %p577 = scmp.lt.s32.totalorder %s42, 1
          %s578 = scalar_select %p577, %s42, 1
          %s579 = smul.addr %s578, 16
          %s580 = smul.addr %s579, 4
          %s581 = scalar_lea.vmem %s12, %s580
        $region76: #{text_encoder_forward.1} parent=27 // pred_fallthru
          _
        // Predicated region
        $region77: #{text_encoder_forward.1} parent=27 // pred_check
          %p582 = pneg %p378
        $region78: #{text_encoder_forward.1} parent=27 // pred_check_branch
          %584 = sbr.rel (%p582) target = $region80
        $region79: #{text_encoder_forward.1} parent=27 // pred_region
          %p585 = scmp.lt.s32.totalorder %s42, 1
          %s586 = scalar_select %p585, %s42, 1
          %s587 = scalar_lea.vmem %s13, %s586
        $region80: #{text_encoder_forward.1} parent=27 // pred_fallthru
          _
      $region28: #{text_encoder_forward.1} parent=5 // pred_fallthru
        _
      %p588 = scmp.le.s32.totalorder 1, %s34
      %p589 = scmp.lt.s32.totalorder %s34, 5
      %p590 = pnand %p588, %p589
      %p591 = pneg %p590
      // Predicated region
      $region81: #{text_encoder_forward.1} parent=5 // pred_check
        _
      $region82: #{text_encoder_forward.1} parent=5 // pred_check_branch
        %593 = sbr.rel (%p590) target = $region84
      $region83: #{text_encoder_forward.1} parent=5 // pred_region
        %s594 = ssub.s32 %s34, 1
        %p595 = scmp.lt.s32.totalorder %s43, 1
        %s596 = scalar_select %p595, %s43, 1
        %s597 = smul.addr %s596, 8
        %s598 = scalar_lea.vmem %s1, %s597
        %p599 = pneg %p72
        %p600 = pneg %p69
        %p601 = scmp.lt.s32.totalorder %s44, 1
        %s602 = scalar_select %p601, %s44, 1
        %s603 = scalar_lea.vmem %s2, %s602
        %p604 = pneg %p98
        %p605 = pneg %p95
        %p606 = scmp.lt.s32.totalorder %s44, 1
        %s607 = scalar_select %p606, %s44, 1
        %s608 = scalar_lea.vmem %s3, %s607
        %p609 = pneg %p124
        %p610 = pneg %p121
        %p611 = scmp.lt.s32.totalorder %s44, 1
        %s612 = scalar_select %p611, %s44, 1
        %s613 = smul.addr %s612, 4
        %s614 = smul.addr %s613, 4
        %s615 = scalar_lea.vmem %s4, %s614
        %p616 = pneg %p150
        %p617 = pneg %p147
        %p618 = scmp.lt.s32.totalorder %s44, 1
        %s619 = scalar_select %p618, %s44, 1
        %s620 = scalar_lea.vmem %s5, %s619
        %p621 = pneg %p176
        %p622 = pneg %p173
        %p623 = scmp.lt.s32.totalorder %s44, 1
        %s624 = scalar_select %p623, %s44, 1
        %s625 = smul.addr %s624, 4
        %s626 = smul.addr %s625, 4
        %s627 = scalar_lea.vmem %s6, %s626
        %p628 = pneg %p202
        %p629 = pneg %p199
        %p630 = scmp.lt.s32.totalorder %s44, 1
        %s631 = scalar_select %p630, %s44, 1
        %s632 = scalar_lea.vmem %s7, %s631
        %p633 = pneg %p228
        %p634 = pneg %p225
        %p635 = scmp.lt.s32.totalorder %s44, 1
        %s636 = scalar_select %p635, %s44, 1
        %s637 = scalar_lea.vmem %s8, %s636
        %p638 = pneg %p254
        %p639 = pneg %p251
        %p640 = scmp.lt.s32.totalorder %s44, 1
        %s641 = scalar_select %p640, %s44, 1
        %s642 = scalar_lea.vmem %s9, %s641
        %p643 = pneg %p280
        %p644 = pneg %p277
        %p645 = scmp.lt.s32.totalorder %s44, 1
        %s646 = scalar_select %p645, %s44, 1
        %s647 = smul.addr %s646, 4
        %s648 = smul.addr %s647, 4
        %s649 = scalar_lea.vmem %s10, %s648
        %p650 = pneg %p306
        %p651 = pneg %p303
        %p652 = scmp.lt.s32.totalorder %s44, 1
        %s653 = scalar_select %p652, %s44, 1
        %s654 = scalar_lea.vmem %s11, %s653
        %p655 = pneg %p332
        %p656 = pneg %p329
        %p657 = scmp.lt.s32.totalorder %s44, 1
        %s658 = scalar_select %p657, %s44, 1
        %s659 = smul.addr %s658, 16
        %s660 = smul.addr %s659, 4
        %s661 = scalar_lea.vmem %s12, %s660
        %p662 = pneg %p358
        %p663 = pneg %p355
        %p664 = scmp.lt.s32.totalorder %s44, 1
        %s665 = scalar_select %p664, %s44, 1
        %s666 = scalar_lea.vmem %s13, %s665
        %p667 = pneg %p384
        %p668 = pneg %p381
        %p669 = pneg %p405
        %p670 = pneg %p402
        %p671 = pneg %p426
        %p672 = pneg %p423
        %p673 = pneg %p447
        %p674 = pneg %p444
        %p675 = pneg %p473
        %p676 = pneg %p470
        %s677 = sand.u32 %s460, 1
        %s678 = scalar_lea.sflag [#allocation7], %s677
        %s679 = sand.u32 %s460, 1
        %s680 = scalar_lea.vmem [#allocation6], %s679
        %p681 = scmp.lt.s32.totalorder %s43, 1
        %s682 = scalar_select %p681, %s43, 1
        %s683 = smul.addr %s682, 8
        %s684 = scalar_lea.vmem %s1, %s683
        %p685 = scmp.lt.s32.totalorder %s44, 1
        %s686 = scalar_select %p685, %s44, 1
        %s687 = scalar_lea.vmem %s2, %s686
        %p688 = scmp.lt.s32.totalorder %s44, 1
        %s689 = scalar_select %p688, %s44, 1
        %s690 = scalar_lea.vmem %s3, %s689
        %p691 = scmp.lt.s32.totalorder %s44, 1
        %s692 = scalar_select %p691, %s44, 1
        %s693 = smul.addr %s692, 4
        %s694 = smul.addr %s693, 4
        %s695 = scalar_lea.vmem %s4, %s694
        %p696 = scmp.lt.s32.totalorder %s44, 1
        %s697 = scalar_select %p696, %s44, 1
        %s698 = scalar_lea.vmem %s5, %s697
        %p699 = scmp.lt.s32.totalorder %s44, 1
        %s700 = scalar_select %p699, %s44, 1
        %s701 = smul.addr %s700, 4
        %s702 = smul.addr %s701, 4
        %s703 = scalar_lea.vmem %s6, %s702
        %p704 = scmp.lt.s32.totalorder %s44, 1
        %s705 = scalar_select %p704, %s44, 1
        %s706 = scalar_lea.vmem %s7, %s705
        %p707 = scmp.lt.s32.totalorder %s44, 1
        %s708 = scalar_select %p707, %s44, 1
        %s709 = scalar_lea.vmem %s8, %s708
        %p710 = scmp.lt.s32.totalorder %s44, 1
        %s711 = scalar_select %p710, %s44, 1
        %s712 = scalar_lea.vmem %s9, %s711
        %p713 = scmp.lt.s32.totalorder %s44, 1
        %s714 = scalar_select %p713, %s44, 1
        %s715 = smul.addr %s714, 4
        %s716 = smul.addr %s715, 4
        %s717 = scalar_lea.vmem %s10, %s716
        %p718 = scmp.lt.s32.totalorder %s44, 1
        %s719 = scalar_select %p718, %s44, 1
        %s720 = scalar_lea.vmem %s11, %s719
        %p721 = scmp.lt.s32.totalorder %s44, 1
        %s722 = scalar_select %p721, %s44, 1
        %s723 = smul.addr %s722, 16
        %s724 = smul.addr %s723, 4
        %s725 = scalar_lea.vmem %s12, %s724
        %p726 = scmp.lt.s32.totalorder %s44, 1
        %s727 = scalar_select %p726, %s44, 1
        %s728 = scalar_lea.vmem %s13, %s727
        %p730 = scmp.eq.s32.totalorder %s44, 0
        // Predicated region
        $region85: #{text_encoder_forward.1} parent=83 // pred_check
          %p731 = pneg %p730
        $region86: #{text_encoder_forward.1} parent=83 // pred_check_branch
          %733 = sbr.rel (%p731) target = $region88
        $region87: #{text_encoder_forward.1} parent=83 // pred_region
          %v734 = vld [vmem:[%s684] sm:$0xff]
          %vm735 = vcmask 261120
          %736 = vst.msk [vmem:[#allocation2] sm:$0xff] %vm735, %v734
        $region88: #{text_encoder_forward.1} parent=83 // pred_fallthru
          _
        %v737 = vld [vmem:[#allocation2] sm:$0xff]
        %v738 = vld [vmem:[%s687] sm:$0x1]
        %v739 = vld [vmem:[%s690] sm:$0x1]
        %vm740 = vcmask 261120
        %v741 = vsel %vm740, %v737, 0.0
        %742 = vadd.xlane.f32.xlu0 %v741
        %v743 = vpop.xlane.xlu0 %742
        %v744 = vrcp.pop 32.0
        %v745 = vmul.f32 32.0, %v744
        %v746 = vsub.f32 1.0, %v745
        %v747 = vmul.f32 %v744, %v746
        %v748 = vadd.f32 %v744, %v747
        %vm749 = vweird.f32 %v744
        %v750 = vsel %vm749, %v744, %v748
        %v751 = vmul.f32 %v743, %v750
        %v752 = vsub.f32 %v737, %v751
        %v753 = vmul.f32 %v752, %v752
        %v754 = vsel %vm740, %v753, 0.0
        %755 = vadd.xlane.f32.xlu0 %v754
        %v756 = vpop.xlane.xlu0 %755
        %v757 = vmul.f32 %v756, %v750
        %v758 = vadd.f32 %v757, 1e-05
        %v759 = vrsqrt.pop %v758
        %v760 = vmul.f32 %v759, %v758
        %v761 = vmul.f32 %v760, %v759
        %v762 = vmul.f32 0.5, %v761
        %v763 = vsub.f32 1.5, %v762
        %v764 = vmul.f32 %v759, %v763
        %vm765 = vweird.f32 %v758
        %vm766 = vweird.f32 %v759
        %vm767 = vmor %vm765, %vm766
        %v768 = vsel %vm767, %v759, %v764
        %v769 = vmul.f32 %v752, %v768
        %v771 = vperm.slane %v738, 0
        %v773 = vmul.f32 %v769, %v771
        %v775 = vperm.slane %v739, 0
        %v777 = vadd.f32 %v773, %v775
        %v778 = vpack.c.bf16 %v777, %v777
        %v779 = vld [vmem:[%s695] sm:$0xf]
        %v780 = vld [vmem:[%s695 + $0x4] sm:$0xf]
        %v781 = vld [vmem:[%s695 + $0x8] sm:$0xf]
        %v782 = vld [vmem:[%s695 + $0xc] sm:$0xf]
        %v783 = vld [vmem:[%s698] sm:$0x1]
        %v785 = vperm.slane %v783, 0
        %v791 = vunpack.c.l.b16 %v779
        %v792 = vunpack.c.l.b16 %v780
        %v793 = vunpack.c.l.b16 %v781
        %v794 = vunpack.c.l.b16 %v782
        %v795 = vpack.c.b16 %v792, %v791
        %v796 = vpack.c.b16 %v794, %v793
        %v800 = vsel %vm740, %v778, 0
        %802 = vmatpush.bf16.msra.mxu0 0
        %803 = vmatpush.bf16.msra.mxu0 0
        %804 = vmatpush.bf16.msra.mxu0 0
        %805 = vmatpush.bf16.msra.mxu0 0
        %806 = vmatpush.bf16.msra.mxu0 0
        %807 = vmatpush.bf16.msra.mxu0 0
        %808 = vmatpush.bf16.msra.mxu0 %v796
        %809 = vmatpush.bf16.msra.mxu0 %v795
        %810 = vmatmul.bf16.gmra.mxu0 %v800
        %v811 = vpop.f32.mrf.mxu0
        %v812 = vadd.f32 %v785, %v811
        %v813 = vpop.f32.mrf.mxu0
        %814 = vdwg.mxu0
        %v815 = vlaneseq
        %v816 = vshrl.u32 %v815, 7
        %v817 = vlaneseq
        %v818 = vand.u32 %v817, 127
        %vm819 = vcmp.le.s32.totalorder %v818, %v816
        %v820 = vsel %vm819, 0.0, -1e+30
        %v821 = vpack.c.bf16 %v812, %v812
        %823 = vrot.lane.b32.xlu0 %v821, 96
        %v824 = vpop.permute.xlu0 %823
        %vm825 = vcmask 64512
        %v827 = vsel %vm825, %v821, 0
        %v830 = vsel %vm825, %v824, 0
        %832 = vmatpush.bf16.xpose.msra.mxu0 0
        %833 = vmatpush.bf16.xpose.msra.mxu0 0
        %834 = vmatpush.bf16.xpose.msra.mxu0 0
        %835 = vmatpush.bf16.xpose.msra.mxu0 0
        %836 = vmatpush.bf16.xpose.msra.mxu0 0
        %837 = vmatpush.bf16.xpose.msra.mxu0 0
        %838 = vmatpush.bf16.xpose.msra.mxu0 0
        %839 = vmatpush.bf16.xpose.msra.mxu0 %v830
        %840 = vmatmul.bf16.gmra.mxu0 %v827
        %v841 = vpop.f32.mrf.mxu0
        %v842 = vadd.f32 %v820, %v841
        %v843 = vpop.f32.mrf.mxu0
        %844 = vdwg.mxu0
        %v845 = vsel %vm825, %v842, -inf
        %846 = vmax.xlane.f32.xlu0 %v845
        %v847 = vpop.xlane.xlu0 %846
        %v848 = vsub.f32 %v842, %v847
        %v849 = vmul.f32 %v848, 1.442695
        %v850 = vpow.pop %v849
        %v851 = vsel %vm825, %v850, 0.0
        %852 = vadd.xlane.f32.xlu0 %v851
        %v853 = vpop.xlane.xlu0 %852
        %v854 = vrcp.pop %v853
        %v855 = vmul.f32 %v850, %v854
        %v856 = vpack.c.bf16 %v855, %v855
        %857 = vrot.lane.b32.xlu0 %v821, 64
        %v858 = vpop.permute.xlu0 %857
        %v860 = vsel %vm825, %v856, 0
        %vm862 = vcmask 1043456
        %v864 = vsel %vm862, %v858, 0
        %866 = vmatpush.bf16.msra.mxu0 0
        %867 = vmatpush.bf16.msra.mxu0 0
        %868 = vmatpush.bf16.msra.mxu0 0
        %869 = vmatpush.bf16.msra.mxu0 0
        %870 = vmatpush.bf16.msra.mxu0 0
        %871 = vmatpush.bf16.msra.mxu0 0
        %872 = vmatpush.bf16.msra.mxu0 0
        %873 = vmatpush.bf16.msra.mxu0 %v864
        %874 = vmatmul.bf16.gmra.mxu0 %v860
        %v875 = vpop.f32.mrf.mxu0
        %v876 = vadd.f32 0.0, %v875
        %v877 = vpop.f32.mrf.mxu0
        %878 = vdwg.mxu0
        %879 = vst.msk [vmem:[#allocation3] sm:$0xff] %vm825, %v876
        %880 = vrot.lane.b32.xlu0 %v821, 120
        %v881 = vpop.permute.xlu0 %880
        %882 = vrot.lane.b32.xlu0 %v821, 88
        %v883 = vpop.permute.xlu0 %882
        %v885 = vsel %vm825, %v881, 0
        %v888 = vsel %vm825, %v883, 0
        %890 = vmatpush.bf16.xpose.msra.mxu0 0
        %891 = vmatpush.bf16.xpose.msra.mxu0 0
        %892 = vmatpush.bf16.xpose.msra.mxu0 0
        %893 = vmatpush.bf16.xpose.msra.mxu0 0
        %894 = vmatpush.bf16.xpose.msra.mxu0 0
        %895 = vmatpush.bf16.xpose.msra.mxu0 0
        %896 = vmatpush.bf16.xpose.msra.mxu0 0
        %897 = vmatpush.bf16.xpose.msra.mxu0 %v888
        %898 = vmatmul.bf16.gmra.mxu0 %v885
        %v899 = vpop.f32.mrf.mxu0
        %v900 = vadd.f32 %v820, %v899
        %v901 = vpop.f32.mrf.mxu0
        %902 = vdwg.mxu0
        %v903 = vsel %vm825, %v900, -inf
        %904 = vmax.xlane.f32.xlu0 %v903
        %v905 = vpop.xlane.xlu0 %904
        %v906 = vsub.f32 %v900, %v905
        %v907 = vmul.f32 %v906, 1.442695
        %v908 = vpow.pop %v907
        %v909 = vsel %vm825, %v908, 0.0
        %910 = vadd.xlane.f32.xlu0 %v909
        %v911 = vpop.xlane.xlu0 %910
        %v912 = vrcp.pop %v911
        %v913 = vmul.f32 %v908, %v912
        %v914 = vpack.c.bf16 %v913, %v913
        %915 = vrot.lane.b32.xlu0 %v821, 56
        %v916 = vpop.permute.xlu0 %915
        %v918 = vsel %vm825, %v914, 0
        %v921 = vsel %vm862, %v916, 0
        %923 = vmatpush.bf16.msra.mxu0 0
        %924 = vmatpush.bf16.msra.mxu0 0
        %925 = vmatpush.bf16.msra.mxu0 0
        %926 = vmatpush.bf16.msra.mxu0 0
        %927 = vmatpush.bf16.msra.mxu0 0
        %928 = vmatpush.bf16.msra.mxu0 0
        %929 = vmatpush.bf16.msra.mxu0 0
        %930 = vmatpush.bf16.msra.mxu0 %v921
        %931 = vmatmul.bf16.gmra.mxu0 %v918
        %v932 = vpop.f32.mrf.mxu0
        %v933 = vadd.f32 0.0, %v932
        %v934 = vpop.f32.mrf.mxu0
        %935 = vdwg.mxu0
        %937 = vrot.lane.b32.xlu0 %v933, 8
        %v938 = vpop.permute.xlu0 %937
        %vm940 = vcmask 130112
        %941 = vst.msk [vmem:[#allocation3] sm:$0xff] %vm940, %v938
        %942 = vrot.lane.b32.xlu0 %v821, 112
        %v943 = vpop.permute.xlu0 %942
        %944 = vrot.lane.b32.xlu0 %v821, 80
        %v945 = vpop.permute.xlu0 %944
        %v947 = vsel %vm825, %v943, 0
        %v950 = vsel %vm825, %v945, 0
        %952 = vmatpush.bf16.xpose.msra.mxu0 0
        %953 = vmatpush.bf16.xpose.msra.mxu0 0
        %954 = vmatpush.bf16.xpose.msra.mxu0 0
        %955 = vmatpush.bf16.xpose.msra.mxu0 0
        %956 = vmatpush.bf16.xpose.msra.mxu0 0
        %957 = vmatpush.bf16.xpose.msra.mxu0 0
        %958 = vmatpush.bf16.xpose.msra.mxu0 0
        %959 = vmatpush.bf16.xpose.msra.mxu0 %v950
        %960 = vmatmul.bf16.gmra.mxu0 %v947
        %v961 = vpop.f32.mrf.mxu0
        %v962 = vadd.f32 %v820, %v961
        %v963 = vpop.f32.mrf.mxu0
        %964 = vdwg.mxu0
        %v965 = vsel %vm825, %v962, -inf
        %966 = vmax.xlane.f32.xlu0 %v965
        %v967 = vpop.xlane.xlu0 %966
        %v968 = vsub.f32 %v962, %v967
        %v969 = vmul.f32 %v968, 1.442695
        %v970 = vpow.pop %v969
        %v971 = vsel %vm825, %v970, 0.0
        %972 = vadd.xlane.f32.xlu0 %v971
        %v973 = vpop.xlane.xlu0 %972
        %v974 = vrcp.pop %v973
        %v975 = vmul.f32 %v970, %v974
        %v976 = vpack.c.bf16 %v975, %v975
        %977 = vrot.lane.b32.xlu0 %v821, 48
        %v978 = vpop.permute.xlu0 %977
        %v980 = vsel %vm825, %v976, 0
        %v983 = vsel %vm862, %v978, 0
        %985 = vmatpush.bf16.msra.mxu0 0
        %986 = vmatpush.bf16.msra.mxu0 0
        %987 = vmatpush.bf16.msra.mxu0 0
        %988 = vmatpush.bf16.msra.mxu0 0
        %989 = vmatpush.bf16.msra.mxu0 0
        %990 = vmatpush.bf16.msra.mxu0 0
        %991 = vmatpush.bf16.msra.mxu0 0
        %992 = vmatpush.bf16.msra.mxu0 %v983
        %993 = vmatmul.bf16.gmra.mxu0 %v980
        %v994 = vpop.f32.mrf.mxu0
        %v995 = vadd.f32 0.0, %v994
        %v996 = vpop.f32.mrf.mxu0
        %997 = vdwg.mxu0
        %999 = vrot.lane.b32.xlu0 %v995, 16
        %v1000 = vpop.permute.xlu0 %999
        %vm1002 = vcmask 195712
        %1003 = vst.msk [vmem:[#allocation3] sm:$0xff] %vm1002, %v1000
        %1004 = vrot.lane.b32.xlu0 %v821, 104
        %v1005 = vpop.permute.xlu0 %1004
        %1006 = vrot.lane.b32.xlu0 %v821, 72
        %v1007 = vpop.permute.xlu0 %1006
        %v1009 = vsel %vm825, %v1005, 0
        %v1012 = vsel %vm825, %v1007, 0
        %1014 = vmatpush.bf16.xpose.msra.mxu0 0
        %1015 = vmatpush.bf16.xpose.msra.mxu0 0
        %1016 = vmatpush.bf16.xpose.msra.mxu0 0
        %1017 = vmatpush.bf16.xpose.msra.mxu0 0
        %1018 = vmatpush.bf16.xpose.msra.mxu0 0
        %1019 = vmatpush.bf16.xpose.msra.mxu0 0
        %1020 = vmatpush.bf16.xpose.msra.mxu0 0
        %1021 = vmatpush.bf16.xpose.msra.mxu0 %v1012
        %1022 = vmatmul.bf16.gmra.mxu0 %v1009
        %v1023 = vpop.f32.mrf.mxu0
        %v1024 = vadd.f32 %v820, %v1023
        %v1025 = vpop.f32.mrf.mxu0
        %1026 = vdwg.mxu0
        %v1027 = vsel %vm825, %v1024, -inf
        %1028 = vmax.xlane.f32.xlu0 %v1027
        %v1029 = vpop.xlane.xlu0 %1028
        %v1030 = vsub.f32 %v1024, %v1029
        %v1031 = vmul.f32 %v1030, 1.442695
        %v1032 = vpow.pop %v1031
        %v1033 = vsel %vm825, %v1032, 0.0
        %1034 = vadd.xlane.f32.xlu0 %v1033
        %v1035 = vpop.xlane.xlu0 %1034
        %v1036 = vrcp.pop %v1035
        %v1037 = vmul.f32 %v1032, %v1036
        %v1038 = vpack.c.bf16 %v1037, %v1037
        %1039 = vrot.lane.b32.xlu0 %v821, 40
        %v1040 = vpop.permute.xlu0 %1039
        %v1042 = vsel %vm825, %v1038, 0
        %v1045 = vsel %vm862, %v1040, 0
        %1047 = vmatpush.bf16.msra.mxu0 0
        %1048 = vmatpush.bf16.msra.mxu0 0
        %1049 = vmatpush.bf16.msra.mxu0 0
        %1050 = vmatpush.bf16.msra.mxu0 0
        %1051 = vmatpush.bf16.msra.mxu0 0
        %1052 = vmatpush.bf16.msra.mxu0 0
        %1053 = vmatpush.bf16.msra.mxu0 0
        %1054 = vmatpush.bf16.msra.mxu0 %v1045
        %1055 = vmatmul.bf16.gmra.mxu0 %v1042
        %v1056 = vpop.f32.mrf.mxu0
        %v1057 = vadd.f32 0.0, %v1056
        %v1058 = vpop.f32.mrf.mxu0
        %1059 = vdwg.mxu0
        %1061 = vrot.lane.b32.xlu0 %v1057, 24
        %v1062 = vpop.permute.xlu0 %1061
        %vm1064 = vcmask 261312
        %1065 = vst.msk [vmem:[#allocation3] sm:$0xff] %vm1064, %v1062
        %v1066 = vld [vmem:[#allocation3] sm:$0xff]
        %v1067 = vpack.c.bf16 %v1066, %v1066
        %v1068 = vld [vmem:[%s703] sm:$0xf]
        %v1069 = vld [vmem:[%s703 + $0x4] sm:$0xf]
        %v1070 = vld [vmem:[%s703 + $0x8] sm:$0xf]
        %v1071 = vld [vmem:[%s703 + $0xc] sm:$0xf]
        %v1072 = vld [vmem:[%s706] sm:$0x1]
        %v1074 = vperm.slane %v1072, 0
        %v1080 = vunpack.c.l.b16 %v1068
        %v1081 = vunpack.c.l.b16 %v1069
        %v1082 = vunpack.c.l.b16 %v1070
        %v1083 = vunpack.c.l.b16 %v1071
        %v1084 = vpack.c.b16 %v1081, %v1080
        %v1085 = vpack.c.b16 %v1083, %v1082
        %v1089 = vsel %vm740, %v1067, 0
        %1091 = vmatpush.bf16.msra.mxu0 0
        %1092 = vmatpush.bf16.msra.mxu0 0
        %1093 = vmatpush.bf16.msra.mxu0 0
        %1094 = vmatpush.bf16.msra.mxu0 0
        %1095 = vmatpush.bf16.msra.mxu0 0
        %1096 = vmatpush.bf16.msra.mxu0 0
        %1097 = vmatpush.bf16.msra.mxu0 %v1085
        %1098 = vmatpush.bf16.msra.mxu0 %v1084
        %1099 = vmatmul.bf16.gmra.mxu0 %v1089
        %v1100 = vpop.f32.mrf.mxu0
        %v1101 = vadd.f32 %v1074, %v1100
        %v1102 = vpop.f32.mrf.mxu0
        %1103 = vdwg.mxu0
        %v1104 = vadd.f32 %v737, %v1101
        %v1105 = vld [vmem:[%s709] sm:$0x1]
        %v1106 = vld [vmem:[%s712] sm:$0x1]
        %v1107 = vsel %vm740, %v1104, 0.0
        %1108 = vadd.xlane.f32.xlu0 %v1107
        %v1109 = vpop.xlane.xlu0 %1108
        %v1110 = vmul.f32 %v1109, %v750
        %v1111 = vsub.f32 %v1104, %v1110
        %v1112 = vmul.f32 %v1111, %v1111
        %v1113 = vsel %vm740, %v1112, 0.0
        %1114 = vadd.xlane.f32.xlu0 %v1113
        %v1115 = vpop.xlane.xlu0 %1114
        %v1116 = vmul.f32 %v1115, %v750
        %v1117 = vadd.f32 %v1116, 1e-05
        %v1118 = vrsqrt.pop %v1117
        %v1119 = vmul.f32 %v1118, %v1117
        %v1120 = vmul.f32 %v1119, %v1118
        %v1121 = vmul.f32 0.5, %v1120
        %v1122 = vsub.f32 1.5, %v1121
        %v1123 = vmul.f32 %v1118, %v1122
        %vm1124 = vweird.f32 %v1117
        %vm1125 = vweird.f32 %v1118
        %vm1126 = vmor %vm1124, %vm1125
        %v1127 = vsel %vm1126, %v1118, %v1123
        %v1128 = vmul.f32 %v1111, %v1127
        %v1130 = vperm.slane %v1105, 0
        %v1132 = vmul.f32 %v1128, %v1130
        %v1134 = vperm.slane %v1106, 0
        %v1136 = vadd.f32 %v1132, %v1134
        %v1137 = vpack.c.bf16 %v1136, %v1136
        %v1138 = vld [vmem:[%s717] sm:$0xf]
        %v1139 = vld [vmem:[%s717 + $0x4] sm:$0xf]
        %v1140 = vld [vmem:[%s717 + $0x8] sm:$0xf]
        %v1141 = vld [vmem:[%s717 + $0xc] sm:$0xf]
        %v1142 = vld [vmem:[%s720] sm:$0x1]
        %v1144 = vperm.slane %v1142, 0
        %v1150 = vunpack.c.l.b16 %v1138
        %v1151 = vunpack.c.l.b16 %v1139
        %v1152 = vunpack.c.l.b16 %v1140
        %v1153 = vunpack.c.l.b16 %v1141
        %v1154 = vpack.c.b16 %v1151, %v1150
        %v1155 = vpack.c.b16 %v1153, %v1152
        %v1159 = vsel %vm740, %v1137, 0
        %1161 = vmatpush.bf16.msra.mxu0 0
        %1162 = vmatpush.bf16.msra.mxu0 0
        %1163 = vmatpush.bf16.msra.mxu0 0
        %1164 = vmatpush.bf16.msra.mxu0 0
        %1165 = vmatpush.bf16.msra.mxu0 0
        %1166 = vmatpush.bf16.msra.mxu0 0
        %1167 = vmatpush.bf16.msra.mxu0 %v1155
        %1168 = vmatpush.bf16.msra.mxu0 %v1154
        %1169 = vmatmul.bf16.gmra.mxu0 %v1159
        %v1170 = vpop.f32.mrf.mxu0
        %v1171 = vadd.f32 %v1144, %v1170
        %v1172 = vpop.f32.mrf.mxu0
        %1173 = vdwg.mxu0
        %v1174 = vmul.f32 %v1171, 1.702
        %v1175 = vxor.u32 %v1174, 2147483648
        %v1176 = vmul.f32 %v1175, 1.442695
        %v1177 = vpow.pop %v1176
        %v1178 = vadd.f32 %v1177, 1.0
        %v1179 = vrcp.pop %v1178
        %v1180 = vmul.f32 %v1178, %v1179
        %v1181 = vsub.f32 1.0, %v1180
        %v1182 = vmul.f32 %v1179, %v1181
        %v1183 = vadd.f32 %v1179, %v1182
        %vm1184 = vweird.f32 %v1178
        %vm1185 = vweird.f32 %v1179
        %vm1186 = vmor %vm1184, %vm1185
        %v1187 = vsel %vm1186, %v1179, %v1183
        %v1188 = vand.u32 2147483647, %v1178
        %vm1189 = vcmp.eq.f32.partialorder %v1188, 8.507059e+37
        %v1190 = vand.u32 %v1178, 2147483648
        %v1191 = vor.u32 1.1754944e-38, %v1190
        %v1192 = vsel %vm1189, %v1191, %v1187
        %v1193 = vmul.f32 1.0, %v1192
        %v1194 = vmul.f32 %v1171, %v1193
        %v1195 = vpack.c.bf16 %v1194, %v1194
        %v1196 = vld [vmem:[%s725] sm:$0xf]
        %v1197 = vld [vmem:[%s725 + $0x4] sm:$0xf]
        %v1198 = vld [vmem:[%s725 + $0x8] sm:$0xf]
        %v1199 = vld [vmem:[%s725 + $0xc] sm:$0xf]
        %v1200 = vld [vmem:[%s725 + $0x10] sm:$0xf]
        %v1201 = vld [vmem:[%s725 + $0x14] sm:$0xf]
        %v1202 = vld [vmem:[%s725 + $0x18] sm:$0xf]
        %v1203 = vld [vmem:[%s725 + $0x1c] sm:$0xf]
        %v1204 = vld [vmem:[%s725 + $0x20] sm:$0xf]
        %v1205 = vld [vmem:[%s725 + $0x24] sm:$0xf]
        %v1206 = vld [vmem:[%s725 + $0x28] sm:$0xf]
        %v1207 = vld [vmem:[%s725 + $0x2c] sm:$0xf]
        %v1208 = vld [vmem:[%s725 + $0x30] sm:$0xf]
        %v1209 = vld [vmem:[%s725 + $0x34] sm:$0xf]
        %v1210 = vld [vmem:[%s725 + $0x38] sm:$0xf]
        %v1211 = vld [vmem:[%s725 + $0x3c] sm:$0xf]
        %v1212 = vld [vmem:[%s728] sm:$0x1]
        %v1214 = vperm.slane %v1212, 0
        %v1232 = vunpack.c.l.b16 %v1196
        %v1233 = vunpack.c.l.b16 %v1197
        %v1234 = vunpack.c.l.b16 %v1198
        %v1235 = vunpack.c.l.b16 %v1199
        %v1236 = vunpack.c.l.b16 %v1200
        %v1237 = vunpack.c.l.b16 %v1201
        %v1238 = vunpack.c.l.b16 %v1202
        %v1239 = vunpack.c.l.b16 %v1203
        %v1240 = vunpack.c.l.b16 %v1204
        %v1241 = vunpack.c.l.b16 %v1205
        %v1242 = vunpack.c.l.b16 %v1206
        %v1243 = vunpack.c.l.b16 %v1207
        %v1244 = vunpack.c.l.b16 %v1208
        %v1245 = vunpack.c.l.b16 %v1209
        %v1246 = vunpack.c.l.b16 %v1210
        %v1247 = vunpack.c.l.b16 %v1211
        %v1248 = vpack.c.b16 %v1233, %v1232
        %v1249 = vpack.c.b16 %v1235, %v1234
        %v1250 = vpack.c.b16 %v1237, %v1236
        %v1251 = vpack.c.b16 %v1239, %v1238
        %v1252 = vpack.c.b16 %v1241, %v1240
        %v1253 = vpack.c.b16 %v1243, %v1242
        %v1254 = vpack.c.b16 %v1245, %v1244
        %v1255 = vpack.c.b16 %v1247, %v1246
        %1264 = vmatpush.bf16.msra.mxu0 %v1255
        %1265 = vmatpush.bf16.msra.mxu0 %v1254
        %1266 = vmatpush.bf16.msra.mxu0 %v1253
        %1267 = vmatpush.bf16.msra.mxu0 %v1252
        %1268 = vmatpush.bf16.msra.mxu0 %v1251
        %1269 = vmatpush.bf16.msra.mxu0 %v1250
        %1270 = vmatpush.bf16.msra.mxu0 %v1249
        %1271 = vmatpush.bf16.msra.mxu0 %v1248
        %1272 = vmatmul.bf16.gmra.mxu0 %v1195
        %v1273 = vpop.f32.mrf.mxu0
        %v1274 = vadd.f32 %v1214, %v1273
        %v1275 = vpop.f32.mrf.mxu0
        %1276 = vdwg.mxu0
        %v1277 = vadd.f32 %v1104, %v1274
        %1278 = vst.msk [vmem:[#allocation2] sm:$0xff] %vm740, %v1277
        %p1279 = scmp.eq.s32.totalorder %s44, 1
        // Predicated region
        $region89: #{text_encoder_forward.1} parent=83 // pred_check
          %p1280 = pneg %p1279
        $region90: #{text_encoder_forward.1} parent=83 // pred_check_branch
          %1282 = sbr.rel (%p1280) target = $region92
        $region91: #{text_encoder_forward.1} parent=83 // pred_region
          %v1283 = vld [vmem:[%s14] sm:$0x1]
          %v1284 = vld [vmem:[%s15] sm:$0x1]
          %v1285 = vsel %vm740, %v1277, 0.0
          %1286 = vadd.xlane.f32.xlu0 %v1285
          %v1287 = vpop.xlane.xlu0 %1286
          %v1288 = vmul.f32 %v1287, %v750
          %v1289 = vsub.f32 %v1277, %v1288
          %v1290 = vmul.f32 %v1289, %v1289
          %v1291 = vsel %vm740, %v1290, 0.0
          %1292 = vadd.xlane.f32.xlu0 %v1291
          %v1293 = vpop.xlane.xlu0 %1292
          %v1294 = vmul.f32 %v1293, %v750
          %v1295 = vadd.f32 %v1294, 1e-05
          %v1296 = vrsqrt.pop %v1295
          %v1297 = vmul.f32 %v1296, %v1295
          %v1298 = vmul.f32 %v1297, %v1296
          %v1299 = vmul.f32 0.5, %v1298
          %v1300 = vsub.f32 1.5, %v1299
          %v1301 = vmul.f32 %v1296, %v1300
          %vm1302 = vweird.f32 %v1295
          %vm1303 = vweird.f32 %v1296
          %vm1304 = vmor %vm1302, %vm1303
          %v1305 = vsel %vm1304, %v1296, %v1301
          %v1306 = vmul.f32 %v1289, %v1305
          %v1308 = vperm.slane %v1283, 0
          %v1310 = vmul.f32 %v1306, %v1308
          %v1312 = vperm.slane %v1284, 0
          %v1314 = vadd.f32 %v1310, %v1312
          %1315 = vst.msk [vmem:[#allocation3] sm:$0xff] %vm740, %v1314
          %s1316 = sld [smem:[#allocation5 + %s43]]
          %s1317 = scalar_lea.vmem [#allocation3], %s1316
          %v1318 = vld [vmem:[%s1317] sm:$0x1]
          %v1319 = vpack.c.bf16 %v1318, %v1318
          %v1320 = vld [vmem:[%s16] sm:$0xf]
          %v1321 = vld [vmem:[%s16 + $0x4] sm:$0xf]
          %v1322 = vld [vmem:[%s16 + $0x8] sm:$0xf]
          %v1323 = vld [vmem:[%s16 + $0xc] sm:$0xf]
          %v1328 = vunpack.c.l.b16 %v1320
          %v1329 = vunpack.c.l.b16 %v1321
          %v1330 = vunpack.c.l.b16 %v1322
          %v1331 = vunpack.c.l.b16 %v1323
          %v1332 = vpack.c.b16 %v1329, %v1328
          %v1333 = vpack.c.b16 %v1331, %v1330
          %v1337 = vsel %vm740, %v1319, 0
          %1339 = vmatpush.bf16.msra.mxu0 0
          %1340 = vmatpush.bf16.msra.mxu0 0
          %1341 = vmatpush.bf16.msra.mxu0 0
          %1342 = vmatpush.bf16.msra.mxu0 0
          %1343 = vmatpush.bf16.msra.mxu0 0
          %1344 = vmatpush.bf16.msra.mxu0 0
          %1345 = vmatpush.bf16.msra.mxu0 %v1333
          %1346 = vmatpush.bf16.msra.mxu0 %v1332
          %1347 = vmatmul.bf16.gmra.mxu0 %v1337
          %v1348 = vpop.f32.mrf.mxu0
          %v1349 = vadd.f32 0.0, %v1348
          %v1350 = vpop.f32.mrf.mxu0
          %1351 = vdwg.mxu0
          %vm1352 = vcmask 253952
          %1353 = vst.msk [vmem:[%s680] sm:$0x1] %vm1352, %v1349
        $region92: #{text_encoder_forward.1} parent=83 // pred_fallthru
          _
        %s1354 = sand.u32 %s460, 1
        %s1355 = scalar_lea.sflag [#allocation7], %s1354
        %s1356 = sand.u32 %s460, 1
        %s1357 = scalar_lea.vmem [#allocation6], %s1356
        // Predicated region
        $region93: #{text_encoder_forward.1} parent=83 // pred_check
          %p1358 = pneg %p470
        $region94: #{text_encoder_forward.1} parent=83 // pred_check_branch
          %1360 = sbr.rel (%p1358) target = $region96
        $region95: #{text_encoder_forward.1} parent=83 // pred_region
          %1362 = vsyncadd %s1355, 0
          %s1363 = scalar_lea.hbm %s17, %s43
          %s1365 = sshll.u32 %s1357, 4
          %s1366 = int_to_ptr.vmem [resolvable:$true] %s1365
          %s1367 = sshll.u32 %s1363, 4
          %s1368 = int_to_ptr.hbm [resolvable:$true] %s1367
          %1370 = dma.vmem_to_hbm [thread:$0]  %s1366, 16, %s1368, %s1355
        $region96: #{text_encoder_forward.1} parent=83 // pred_fallthru
          _
      $region84: #{text_encoder_forward.1} parent=5 // pred_fallthru
        _
      %p1371 = scmp.le.s32.totalorder 2, %s34
      // Predicated region
      $region97: #{text_encoder_forward.1} parent=5 // pred_check
        %p1372 = pneg %p1371
      $region98: #{text_encoder_forward.1} parent=5 // pred_check_branch
        %1374 = sbr.rel (%p1372) target = $region100
      $region99: #{text_encoder_forward.1} parent=5 // pred_region
        %s1375 = ssub.s32 %s34, 2
        // Predicated region
        $region101: #{text_encoder_forward.1} parent=99 // pred_check
          %p1376 = pneg %p476
        $region102: #{text_encoder_forward.1} parent=99 // pred_check_branch
          %1378 = sbr.rel (%p1376) target = $region104
        $region103: #{text_encoder_forward.1} parent=99 // pred_region
          %s1379 = sand.u32 %s461, 1
          %s1380 = scalar_lea.sflag [#allocation7], %s1379
          %s1381 = sand.u32 %s461, 1
          %s1382 = scalar_lea.vmem [#allocation6], %s1381
          %1384 = dma.done %s1380, 16
        $region104: #{text_encoder_forward.1} parent=99 // pred_fallthru
          _
      $region100: #{text_encoder_forward.1} parent=5 // pred_fallthru
        _
    $region6: #{text_encoder_forward.1} parent=1 // loop_footer
      %s38 = sadd.s32 1, %s34
    $region7: #{text_encoder_forward.1} parent=1 // loop_footer_branch
      %33 = sbr.rel target = $region3
    $region8: #{text_encoder_forward.1} parent=1 // loop_exit
      _
    %1385 = vsyncpa [#allocation7], 1
    %s1386 = scalar_lea.sflag [#allocation7], 1
    %1387 = vsyncpa %s1386, 1

</llo_original>
